<compile_context>
chip_gen: v5e
topology: v5e:2x2
jax: 0.10.0
libtpu: 0.0.40
codegen_flags: <defaults>
</compile_context>

<pallas_src>
import jax
import jax.numpy as jnp
from jax.experimental import pallas as pl
from jax.experimental.pallas import tpu as pltpu

K = 7          # kernel_size
P = K // 2     # padding = 3


def _make_kernel(H, W):
    HW = H * W
    PAD = P * W + P          # max |spatial shift| in the flattened layout

    def kernel(w_ref, x_ref, o_ref):
        # w_ref: (2*K*K,)      SMEM   flattened conv weight (in_ch, kh, kw)
        # x_ref: (Nb, C, HW)   VMEM   Nb batch elements, lane-dense spatial axis
        # o_ref: (Nb, 1, HW)   VMEM   sigmoid(conv(cat(mean, max)))
        Nb, C, _ = x_ref.shape
        x = x_ref[...].astype(jnp.float32)                       # (Nb, C, HW)

        # ---- channel-wise mean & max (dim=1 of the PyTorch module) ---------
        avg = jnp.mean(x, axis=1)                                # (Nb, HW)
        mx = jnp.max(x, axis=1)                                  # (Nb, HW)

        # ---- 7x7 conv, 2 in -> 1 out, zero padding, no bias ----------------
        # Zero-extend each flattened row by PAD on both sides: every spatial
        # shift (dy, dx) becomes a static in-bounds lane slice.  Row overflow
        # (dy out of [0, H)) lands in the zero halo automatically; column
        # wrap-around (dx out of [0, W)) is killed by 7 lane masks (one per
        # dx), shared across dy and both feature channels.
        zpad = jnp.zeros((Nb, PAD), jnp.float32)
        avg_p = jnp.concatenate([zpad, avg, zpad], axis=1)       # (Nb, HW+2*PAD)
        mx_p = jnp.concatenate([zpad, mx, zpad], axis=1)

        # Hoist all 98 scalar weight reads out of the unrolled loops.
        wvals = [w_ref[t] for t in range(2 * K * K)]

        col = jax.lax.broadcasted_iota(jnp.int32, (Nb, HW), 1) % W
        acc = jnp.zeros((Nb, HW), jnp.float32)
        for j in range(K):                        # dx = j - P (column offset)
            dx = j - P
            inner = jnp.zeros((Nb, HW), jnp.float32)
            for i in range(K):                    # dy = i - P (row offset)
                s = PAD + (i - P) * W + dx        # static, always in-bounds
                inner = (inner
                         + wvals[i * K + j] * avg_p[:, s:s + HW]
                         + wvals[K * K + i * K + j] * mx_p[:, s:s + HW])
            valid = (col + dx >= 0) & (col + dx < W)
            acc = acc + jnp.where(valid, inner, 0.0)

        o_ref[:, 0, :] = jax.nn.sigmoid(acc).astype(o_ref.dtype)

    return kernel


def _pick_batch_block(N, bytes_per_batch, budget_bytes=6 << 20, min_grid=2):
    """Largest divisor of N whose x-block fits the VMEM budget while keeping
    at least `min_grid` grid steps (feeds both v7x TensorCores)."""
    best = 1
    for d in range(1, N + 1):
        if N % d:
            continue
        if d * bytes_per_batch > budget_bytes:
            continue
        if N >= min_grid and N // d < min_grid:
            continue
        best = d
    return best


def spatial_attention(x, w):
    """x: (N, C, H, W);  w: (1, 2, K, K) conv weight (OIHW, bias-free)."""
    N, C, H, W = x.shape
    HW = H * W
    x3 = x.reshape(N, C, HW)                      # lane-dense spatial axis
    w_flat = w.reshape(-1).astype(jnp.float32)    # (2*K*K,) -> SMEM

    nb = _pick_batch_block(N, C * HW * x.dtype.itemsize)
    grid = (N // nb,)
    # NOTE: for extremely large C*H*W a channel-block grid axis with running
    # sum/max accumulators would be needed to stay inside v7x's 64 MiB VMEM;
    # all standard CBAM/ResNet shapes (C<=2048, <=56x56) fit comfortably.

    out = pl.pallas_call(
        _make_kernel(H, W),
        out_shape=jax.ShapeDtypeStruct((N, 1, HW), x.dtype),
        grid_spec=pltpu.PrefetchScalarGridSpec(
            num_scalar_prefetch=0,
            grid=grid,
            in_specs=[
                pl.BlockSpec(memory_space=pltpu.MemorySpace.SMEM),     # weights
                pl.BlockSpec((nb, C, HW), lambda n: (n, 0, 0)),        # x
            ],
            out_specs=pl.BlockSpec((nb, 1, HW), lambda n: (n, 0, 0)),
        ),
        compiler_params=pltpu.CompilerParams(
            dimension_semantics=("parallel",),
            vmem_limit_bytes=32 * 1024 * 1024,
        ),
    )(w_flat, x3)
    return out.reshape(N, 1, H, W)


def _reference(x, w):
    avg = jnp.mean(x, axis=1, keepdims=True)
    mx = jnp.max(x, axis=1, keepdims=True)
    feat = jnp.concatenate([avg, mx], axis=1)
    y = jax.lax.conv_general_dilated(
        feat, w, window_strides=(1, 1), padding=[(P, P), (P, P)],
        dimension_numbers=("NCHW", "OIHW", "NCHW"))
    return jax.nn.sigmoid(y)


if __name__ == "__main__":
    key = jax.random.PRNGKey(0)
    kx, kw = jax.random.split(key)

    N, C, H, W = 2, 4, 16, 16
    x = jax.random.normal(kx, (N, C, H, W), dtype=jnp.float32)

    # Deterministic init mimicking PyTorch Conv2d default (kaiming uniform):
    fan_in = 2 * K * K
    bound = 1.0 / jnp.sqrt(fan_in)
    w = jax.random.uniform(kw, (1, 2, K, K), dtype=jnp.float32,
                           minval=-bound, maxval=bound)

    out = spatial_attention(x, w)
    jax.block_until_ready(out)

    ref = _reference(x, w)
    assert out.shape == (N, 1, H, W)
    assert jnp.allclose(out, ref, atol=1e-5, rtol=1e-5), "mismatch vs reference"

    print("KERNEL_OK")
</pallas_src>

<mosaic_0001>
module attributes {stable_mosaic.version = 11 : i64} {
  func.func @kernel(%arg0: i32, %arg1: memref<98xf32, #tpu.memory_space<smem>>, %arg2: memref<1x4x256xf32, #tpu.memory_space<vmem>>, %arg3: memref<1x1x256xf32, #tpu.memory_space<vmem>>) attributes {dimension_semantics = [#tpu.dimension_semantics<parallel>], iteration_bounds = array<i64: 2>, scalar_prefetch = 0 : i64, scratch_operands = 0 : i64, tpu.core_type = #tpu.core_type<tc>, window_params = [{transform_indices = @transform_0, window_bounds = array<i64: 98>}, {transform_indices = @transform_1, window_bounds = array<i64: 1, 4, 256>}, {transform_indices = @transform_2, window_bounds = array<i64: 1, 1, 256>}]} {
    %c0 = arith.constant 0 : index
    %c0_0 = arith.constant 0 : index
    %c0_1 = arith.constant 0 : index
    %0 = vector.load %arg2[%c0, %c0_0, %c0_1] : memref<1x4x256xf32, #tpu.memory_space<vmem>>, vector<1x4x256xf32>
    %cst = arith.constant dense<0.000000e+00> : vector<1x256xf32>
    %1 = vector.multi_reduction <add>, %0, %cst [1] : vector<1x4x256xf32> to vector<1x256xf32>
    %cst_2 = arith.constant 4.000000e+00 : f32
    %2 = vector.broadcast %cst_2 : f32 to vector<1x256xf32>
    %3 = arith.divf %1, %2 : vector<1x256xf32>
    %cst_3 = arith.constant dense<0xFF800000> : vector<1x256xf32>
    %4 = vector.multi_reduction <maximumf>, %0, %cst_3 [1] : vector<1x4x256xf32> to vector<1x256xf32>
    %cst_4 = arith.constant 0.000000e+00 : f32
    %5 = vector.broadcast %cst_4 : f32 to vector<1x51xf32>
    %6 = tpu.concatenate %5, %3, %5 in 1 : vector<1x51xf32>, vector<1x256xf32>, vector<1x51xf32> -> vector<1x358xf32>
    %7 = tpu.concatenate %5, %4, %5 in 1 : vector<1x51xf32>, vector<1x256xf32>, vector<1x51xf32> -> vector<1x358xf32>
    %c0_5 = arith.constant 0 : index
    %8 = memref.load %arg1[%c0_5] : memref<98xf32, #tpu.memory_space<smem>>
    %c1 = arith.constant 1 : index
    %9 = memref.load %arg1[%c1] : memref<98xf32, #tpu.memory_space<smem>>
    %c2 = arith.constant 2 : index
    %10 = memref.load %arg1[%c2] : memref<98xf32, #tpu.memory_space<smem>>
    %c3 = arith.constant 3 : index
    %11 = memref.load %arg1[%c3] : memref<98xf32, #tpu.memory_space<smem>>
    %c4 = arith.constant 4 : index
    %12 = memref.load %arg1[%c4] : memref<98xf32, #tpu.memory_space<smem>>
    %c5 = arith.constant 5 : index
    %13 = memref.load %arg1[%c5] : memref<98xf32, #tpu.memory_space<smem>>
    %c6 = arith.constant 6 : index
    %14 = memref.load %arg1[%c6] : memref<98xf32, #tpu.memory_space<smem>>
    %c7 = arith.constant 7 : index
    %15 = memref.load %arg1[%c7] : memref<98xf32, #tpu.memory_space<smem>>
    %c8 = arith.constant 8 : index
    %16 = memref.load %arg1[%c8] : memref<98xf32, #tpu.memory_space<smem>>
    %c9 = arith.constant 9 : index
    %17 = memref.load %arg1[%c9] : memref<98xf32, #tpu.memory_space<smem>>
    %c10 = arith.constant 10 : index
    %18 = memref.load %arg1[%c10] : memref<98xf32, #tpu.memory_space<smem>>
    %c11 = arith.constant 11 : index
    %19 = memref.load %arg1[%c11] : memref<98xf32, #tpu.memory_space<smem>>
    %c12 = arith.constant 12 : index
    %20 = memref.load %arg1[%c12] : memref<98xf32, #tpu.memory_space<smem>>
    %c13 = arith.constant 13 : index
    %21 = memref.load %arg1[%c13] : memref<98xf32, #tpu.memory_space<smem>>
    %c14 = arith.constant 14 : index
    %22 = memref.load %arg1[%c14] : memref<98xf32, #tpu.memory_space<smem>>
    %c15 = arith.constant 15 : index
    %23 = memref.load %arg1[%c15] : memref<98xf32, #tpu.memory_space<smem>>
    %c16 = arith.constant 16 : index
    %24 = memref.load %arg1[%c16] : memref<98xf32, #tpu.memory_space<smem>>
    %c17 = arith.constant 17 : index
    %25 = memref.load %arg1[%c17] : memref<98xf32, #tpu.memory_space<smem>>
    %c18 = arith.constant 18 : index
    %26 = memref.load %arg1[%c18] : memref<98xf32, #tpu.memory_space<smem>>
    %c19 = arith.constant 19 : index
    %27 = memref.load %arg1[%c19] : memref<98xf32, #tpu.memory_space<smem>>
    %c20 = arith.constant 20 : index
    %28 = memref.load %arg1[%c20] : memref<98xf32, #tpu.memory_space<smem>>
    %c21 = arith.constant 21 : index
    %29 = memref.load %arg1[%c21] : memref<98xf32, #tpu.memory_space<smem>>
    %c22 = arith.constant 22 : index
    %30 = memref.load %arg1[%c22] : memref<98xf32, #tpu.memory_space<smem>>
    %c23 = arith.constant 23 : index
    %31 = memref.load %arg1[%c23] : memref<98xf32, #tpu.memory_space<smem>>
    %c24 = arith.constant 24 : index
    %32 = memref.load %arg1[%c24] : memref<98xf32, #tpu.memory_space<smem>>
    %c25 = arith.constant 25 : index
    %33 = memref.load %arg1[%c25] : memref<98xf32, #tpu.memory_space<smem>>
    %c26 = arith.constant 26 : index
    %34 = memref.load %arg1[%c26] : memref<98xf32, #tpu.memory_space<smem>>
    %c27 = arith.constant 27 : index
    %35 = memref.load %arg1[%c27] : memref<98xf32, #tpu.memory_space<smem>>
    %c28 = arith.constant 28 : index
    %36 = memref.load %arg1[%c28] : memref<98xf32, #tpu.memory_space<smem>>
    %c29 = arith.constant 29 : index
    %37 = memref.load %arg1[%c29] : memref<98xf32, #tpu.memory_space<smem>>
    %c30 = arith.constant 30 : index
    %38 = memref.load %arg1[%c30] : memref<98xf32, #tpu.memory_space<smem>>
    %c31 = arith.constant 31 : index
    %39 = memref.load %arg1[%c31] : memref<98xf32, #tpu.memory_space<smem>>
    %c32 = arith.constant 32 : index
    %40 = memref.load %arg1[%c32] : memref<98xf32, #tpu.memory_space<smem>>
    %c33 = arith.constant 33 : index
    %41 = memref.load %arg1[%c33] : memref<98xf32, #tpu.memory_space<smem>>
    %c34 = arith.constant 34 : index
    %42 = memref.load %arg1[%c34] : memref<98xf32, #tpu.memory_space<smem>>
    %c35 = arith.constant 35 : index
    %43 = memref.load %arg1[%c35] : memref<98xf32, #tpu.memory_space<smem>>
    %c36 = arith.constant 36 : index
    %44 = memref.load %arg1[%c36] : memref<98xf32, #tpu.memory_space<smem>>
    %c37 = arith.constant 37 : index
    %45 = memref.load %arg1[%c37] : memref<98xf32, #tpu.memory_space<smem>>
    %c38 = arith.constant 38 : index
    %46 = memref.load %arg1[%c38] : memref<98xf32, #tpu.memory_space<smem>>
    %c39 = arith.constant 39 : index
    %47 = memref.load %arg1[%c39] : memref<98xf32, #tpu.memory_space<smem>>
    %c40 = arith.constant 40 : index
    %48 = memref.load %arg1[%c40] : memref<98xf32, #tpu.memory_space<smem>>
    %c41 = arith.constant 41 : index
    %49 = memref.load %arg1[%c41] : memref<98xf32, #tpu.memory_space<smem>>
    %c42 = arith.constant 42 : index
    %50 = memref.load %arg1[%c42] : memref<98xf32, #tpu.memory_space<smem>>
    %c43 = arith.constant 43 : index
    %51 = memref.load %arg1[%c43] : memref<98xf32, #tpu.memory_space<smem>>
    %c44 = arith.constant 44 : index
    %52 = memref.load %arg1[%c44] : memref<98xf32, #tpu.memory_space<smem>>
    %c45 = arith.constant 45 : index
    %53 = memref.load %arg1[%c45] : memref<98xf32, #tpu.memory_space<smem>>
    %c46 = arith.constant 46 : index
    %54 = memref.load %arg1[%c46] : memref<98xf32, #tpu.memory_space<smem>>
    %c47 = arith.constant 47 : index
    %55 = memref.load %arg1[%c47] : memref<98xf32, #tpu.memory_space<smem>>
    %c48 = arith.constant 48 : index
    %56 = memref.load %arg1[%c48] : memref<98xf32, #tpu.memory_space<smem>>
    %c49 = arith.constant 49 : index
    %57 = memref.load %arg1[%c49] : memref<98xf32, #tpu.memory_space<smem>>
    %c50 = arith.constant 50 : index
    %58 = memref.load %arg1[%c50] : memref<98xf32, #tpu.memory_space<smem>>
    %c51 = arith.constant 51 : index
    %59 = memref.load %arg1[%c51] : memref<98xf32, #tpu.memory_space<smem>>
    %c52 = arith.constant 52 : index
    %60 = memref.load %arg1[%c52] : memref<98xf32, #tpu.memory_space<smem>>
    %c53 = arith.constant 53 : index
    %61 = memref.load %arg1[%c53] : memref<98xf32, #tpu.memory_space<smem>>
    %c54 = arith.constant 54 : index
    %62 = memref.load %arg1[%c54] : memref<98xf32, #tpu.memory_space<smem>>
    %c55 = arith.constant 55 : index
    %63 = memref.load %arg1[%c55] : memref<98xf32, #tpu.memory_space<smem>>
    %c56 = arith.constant 56 : index
    %64 = memref.load %arg1[%c56] : memref<98xf32, #tpu.memory_space<smem>>
    %c57 = arith.constant 57 : index
    %65 = memref.load %arg1[%c57] : memref<98xf32, #tpu.memory_space<smem>>
    %c58 = arith.constant 58 : index
    %66 = memref.load %arg1[%c58] : memref<98xf32, #tpu.memory_space<smem>>
    %c59 = arith.constant 59 : index
    %67 = memref.load %arg1[%c59] : memref<98xf32, #tpu.memory_space<smem>>
    %c60 = arith.constant 60 : index
    %68 = memref.load %arg1[%c60] : memref<98xf32, #tpu.memory_space<smem>>
    %c61 = arith.constant 61 : index
    %69 = memref.load %arg1[%c61] : memref<98xf32, #tpu.memory_space<smem>>
    %c62 = arith.constant 62 : index
    %70 = memref.load %arg1[%c62] : memref<98xf32, #tpu.memory_space<smem>>
    %c63 = arith.constant 63 : index
    %71 = memref.load %arg1[%c63] : memref<98xf32, #tpu.memory_space<smem>>
    %c64 = arith.constant 64 : index
    %72 = memref.load %arg1[%c64] : memref<98xf32, #tpu.memory_space<smem>>
    %c65 = arith.constant 65 : index
    %73 = memref.load %arg1[%c65] : memref<98xf32, #tpu.memory_space<smem>>
    %c66 = arith.constant 66 : index
    %74 = memref.load %arg1[%c66] : memref<98xf32, #tpu.memory_space<smem>>
    %c67 = arith.constant 67 : index
    %75 = memref.load %arg1[%c67] : memref<98xf32, #tpu.memory_space<smem>>
    %c68 = arith.constant 68 : index
    %76 = memref.load %arg1[%c68] : memref<98xf32, #tpu.memory_space<smem>>
    %c69 = arith.constant 69 : index
    %77 = memref.load %arg1[%c69] : memref<98xf32, #tpu.memory_space<smem>>
    %c70 = arith.constant 70 : index
    %78 = memref.load %arg1[%c70] : memref<98xf32, #tpu.memory_space<smem>>
    %c71 = arith.constant 71 : index
    %79 = memref.load %arg1[%c71] : memref<98xf32, #tpu.memory_space<smem>>
    %c72 = arith.constant 72 : index
    %80 = memref.load %arg1[%c72] : memref<98xf32, #tpu.memory_space<smem>>
    %c73 = arith.constant 73 : index
    %81 = memref.load %arg1[%c73] : memref<98xf32, #tpu.memory_space<smem>>
    %c74 = arith.constant 74 : index
    %82 = memref.load %arg1[%c74] : memref<98xf32, #tpu.memory_space<smem>>
    %c75 = arith.constant 75 : index
    %83 = memref.load %arg1[%c75] : memref<98xf32, #tpu.memory_space<smem>>
    %c76 = arith.constant 76 : index
    %84 = memref.load %arg1[%c76] : memref<98xf32, #tpu.memory_space<smem>>
    %c77 = arith.constant 77 : index
    %85 = memref.load %arg1[%c77] : memref<98xf32, #tpu.memory_space<smem>>
    %c78 = arith.constant 78 : index
    %86 = memref.load %arg1[%c78] : memref<98xf32, #tpu.memory_space<smem>>
    %c79 = arith.constant 79 : index
    %87 = memref.load %arg1[%c79] : memref<98xf32, #tpu.memory_space<smem>>
    %c80 = arith.constant 80 : index
    %88 = memref.load %arg1[%c80] : memref<98xf32, #tpu.memory_space<smem>>
    %c81 = arith.constant 81 : index
    %89 = memref.load %arg1[%c81] : memref<98xf32, #tpu.memory_space<smem>>
    %c82 = arith.constant 82 : index
    %90 = memref.load %arg1[%c82] : memref<98xf32, #tpu.memory_space<smem>>
    %c83 = arith.constant 83 : index
    %91 = memref.load %arg1[%c83] : memref<98xf32, #tpu.memory_space<smem>>
    %c84 = arith.constant 84 : index
    %92 = memref.load %arg1[%c84] : memref<98xf32, #tpu.memory_space<smem>>
    %c85 = arith.constant 85 : index
    %93 = memref.load %arg1[%c85] : memref<98xf32, #tpu.memory_space<smem>>
    %c86 = arith.constant 86 : index
    %94 = memref.load %arg1[%c86] : memref<98xf32, #tpu.memory_space<smem>>
    %c87 = arith.constant 87 : index
    %95 = memref.load %arg1[%c87] : memref<98xf32, #tpu.memory_space<smem>>
    %c88 = arith.constant 88 : index
    %96 = memref.load %arg1[%c88] : memref<98xf32, #tpu.memory_space<smem>>
    %c89 = arith.constant 89 : index
    %97 = memref.load %arg1[%c89] : memref<98xf32, #tpu.memory_space<smem>>
    %c90 = arith.constant 90 : index
    %98 = memref.load %arg1[%c90] : memref<98xf32, #tpu.memory_space<smem>>
    %c91 = arith.constant 91 : index
    %99 = memref.load %arg1[%c91] : memref<98xf32, #tpu.memory_space<smem>>
    %c92 = arith.constant 92 : index
    %100 = memref.load %arg1[%c92] : memref<98xf32, #tpu.memory_space<smem>>
    %c93 = arith.constant 93 : index
    %101 = memref.load %arg1[%c93] : memref<98xf32, #tpu.memory_space<smem>>
    %c94 = arith.constant 94 : index
    %102 = memref.load %arg1[%c94] : memref<98xf32, #tpu.memory_space<smem>>
    %c95 = arith.constant 95 : index
    %103 = memref.load %arg1[%c95] : memref<98xf32, #tpu.memory_space<smem>>
    %c96 = arith.constant 96 : index
    %104 = memref.load %arg1[%c96] : memref<98xf32, #tpu.memory_space<smem>>
    %c97 = arith.constant 97 : index
    %105 = memref.load %arg1[%c97] : memref<98xf32, #tpu.memory_space<smem>>
    %106 = tpu.iota {dimensions = array<i32: 1>} : vector<1x256xi32>
    %c16_i32 = arith.constant 16 : i32
    %c0_i32 = arith.constant 0 : i32
    %107 = arith.cmpi eq, %c16_i32, %c0_i32 : i32
    %c1_i32 = arith.constant 1 : i32
    %108 = arith.select %107, %c1_i32, %c16_i32 : i32
    %109 = vector.broadcast %108 : i32 to vector<1x256xi32>
    %110 = arith.remsi %106, %109 : vector<1x256xi32>
    %c0_i32_6 = arith.constant 0 : i32
    %111 = vector.broadcast %c0_i32_6 : i32 to vector<1x256xi32>
    %112 = arith.cmpi ne, %110, %111 : vector<1x256xi32>
    %c0_i32_7 = arith.constant 0 : i32
    %113 = vector.broadcast %c0_i32_7 : i32 to vector<1x256xi32>
    %114 = arith.cmpi slt, %110, %113 : vector<1x256xi32>
    %c0_i32_8 = arith.constant 0 : i32
    %115 = arith.cmpi slt, %108, %c0_i32_8 : i32
    %116 = vector.broadcast %115 : i1 to vector<1x256xi1>
    %117 = vector.broadcast %116 : vector<1x256xi1> to vector<1x256xi1>
    %118 = arith.xori %114, %117 : vector<1x256xi1>
    %119 = arith.andi %118, %112 : vector<1x256xi1>
    %120 = vector.broadcast %108 : i32 to vector<1x256xi32>
    %121 = arith.addi %110, %120 : vector<1x256xi32>
    %122 = arith.select %119, %121, %110 : vector<1x256xi1>, vector<1x256xi32>
    %cst_9 = arith.constant 0.000000e+00 : f32
    %123 = vector.broadcast %cst_9 : f32 to vector<1x256xf32>
    %cst_10 = arith.constant 0.000000e+00 : f32
    %124 = vector.broadcast %cst_10 : f32 to vector<1x256xf32>
    %125 = vector.extract_strided_slice %6 {offsets = [0, 0], sizes = [1, 256], strides = [1, 1]} : vector<1x358xf32> to vector<1x256xf32>
    %126 = vector.broadcast %8 : f32 to vector<1x256xf32>
    %127 = arith.mulf %126, %125 : vector<1x256xf32>
    %128 = arith.addf %124, %127 : vector<1x256xf32>
    %129 = vector.extract_strided_slice %7 {offsets = [0, 0], sizes = [1, 256], strides = [1, 1]} : vector<1x358xf32> to vector<1x256xf32>
    %130 = vector.broadcast %57 : f32 to vector<1x256xf32>
    %131 = arith.mulf %130, %129 : vector<1x256xf32>
    %132 = arith.addf %128, %131 : vector<1x256xf32>
    %133 = vector.extract_strided_slice %6 {offsets = [0, 16], sizes = [1, 256], strides = [1, 1]} : vector<1x358xf32> to vector<1x256xf32>
    %134 = vector.broadcast %15 : f32 to vector<1x256xf32>
    %135 = arith.mulf %134, %133 : vector<1x256xf32>
    %136 = arith.addf %132, %135 : vector<1x256xf32>
    %137 = vector.extract_strided_slice %7 {offsets = [0, 16], sizes = [1, 256], strides = [1, 1]} : vector<1x358xf32> to vector<1x256xf32>
    %138 = vector.broadcast %64 : f32 to vector<1x256xf32>
    %139 = arith.mulf %138, %137 : vector<1x256xf32>
    %140 = arith.addf %136, %139 : vector<1x256xf32>
    %141 = vector.extract_strided_slice %6 {offsets = [0, 32], sizes = [1, 256], strides = [1, 1]} : vector<1x358xf32> to vector<1x256xf32>
    %142 = vector.broadcast %22 : f32 to vector<1x256xf32>
    %143 = arith.mulf %142, %141 : vector<1x256xf32>
    %144 = arith.addf %140, %143 : vector<1x256xf32>
    %145 = vector.extract_strided_slice %7 {offsets = [0, 32], sizes = [1, 256], strides = [1, 1]} : vector<1x358xf32> to vector<1x256xf32>
    %146 = vector.broadcast %71 : f32 to vector<1x256xf32>
    %147 = arith.mulf %146, %145 : vector<1x256xf32>
    %148 = arith.addf %144, %147 : vector<1x256xf32>
    %149 = vector.extract_strided_slice %6 {offsets = [0, 48], sizes = [1, 256], strides = [1, 1]} : vector<1x358xf32> to vector<1x256xf32>
    %150 = vector.broadcast %29 : f32 to vector<1x256xf32>
    %151 = arith.mulf %150, %149 : vector<1x256xf32>
    %152 = arith.addf %148, %151 : vector<1x256xf32>
    %153 = vector.extract_strided_slice %7 {offsets = [0, 48], sizes = [1, 256], strides = [1, 1]} : vector<1x358xf32> to vector<1x256xf32>
    %154 = vector.broadcast %78 : f32 to vector<1x256xf32>
    %155 = arith.mulf %154, %153 : vector<1x256xf32>
    %156 = arith.addf %152, %155 : vector<1x256xf32>
    %157 = vector.extract_strided_slice %6 {offsets = [0, 64], sizes = [1, 256], strides = [1, 1]} : vector<1x358xf32> to vector<1x256xf32>
    %158 = vector.broadcast %36 : f32 to vector<1x256xf32>
    %159 = arith.mulf %158, %157 : vector<1x256xf32>
    %160 = arith.addf %156, %159 : vector<1x256xf32>
    %161 = vector.extract_strided_slice %7 {offsets = [0, 64], sizes = [1, 256], strides = [1, 1]} : vector<1x358xf32> to vector<1x256xf32>
    %162 = vector.broadcast %85 : f32 to vector<1x256xf32>
    %163 = arith.mulf %162, %161 : vector<1x256xf32>
    %164 = arith.addf %160, %163 : vector<1x256xf32>
    %165 = vector.extract_strided_slice %6 {offsets = [0, 80], sizes = [1, 256], strides = [1, 1]} : vector<1x358xf32> to vector<1x256xf32>
    %166 = vector.broadcast %43 : f32 to vector<1x256xf32>
    %167 = arith.mulf %166, %165 : vector<1x256xf32>
    %168 = arith.addf %164, %167 : vector<1x256xf32>
    %169 = vector.extract_strided_slice %7 {offsets = [0, 80], sizes = [1, 256], strides = [1, 1]} : vector<1x358xf32> to vector<1x256xf32>
    %170 = vector.broadcast %92 : f32 to vector<1x256xf32>
    %171 = arith.mulf %170, %169 : vector<1x256xf32>
    %172 = arith.addf %168, %171 : vector<1x256xf32>
    %173 = vector.extract_strided_slice %6 {offsets = [0, 96], sizes = [1, 256], strides = [1, 1]} : vector<1x358xf32> to vector<1x256xf32>
    %174 = vector.broadcast %50 : f32 to vector<1x256xf32>
    %175 = arith.mulf %174, %173 : vector<1x256xf32>
    %176 = arith.addf %172, %175 : vector<1x256xf32>
    %177 = vector.extract_strided_slice %7 {offsets = [0, 96], sizes = [1, 256], strides = [1, 1]} : vector<1x358xf32> to vector<1x256xf32>
    %178 = vector.broadcast %99 : f32 to vector<1x256xf32>
    %179 = arith.mulf %178, %177 : vector<1x256xf32>
    %180 = arith.addf %176, %179 : vector<1x256xf32>
    %c-3_i32 = arith.constant -3 : i32
    %181 = vector.broadcast %c-3_i32 : i32 to vector<1x256xi32>
    %182 = arith.addi %122, %181 : vector<1x256xi32>
    %c0_i32_11 = arith.constant 0 : i32
    %183 = vector.broadcast %c0_i32_11 : i32 to vector<1x256xi32>
    %184 = arith.cmpi sge, %182, %183 : vector<1x256xi32>
    %c-3_i32_12 = arith.constant -3 : i32
    %185 = vector.broadcast %c-3_i32_12 : i32 to vector<1x256xi32>
    %186 = arith.addi %122, %185 : vector<1x256xi32>
    %c16_i32_13 = arith.constant 16 : i32
    %187 = vector.broadcast %c16_i32_13 : i32 to vector<1x256xi32>
    %188 = arith.cmpi slt, %186, %187 : vector<1x256xi32>
    %189 = arith.andi %184, %188 : vector<1x256xi1>
    %cst_14 = arith.constant 0.000000e+00 : f32
    %190 = vector.broadcast %cst_14 : f32 to vector<1x256xf32>
    %191 = arith.select %189, %180, %190 : vector<1x256xi1>, vector<1x256xf32>
    %192 = arith.addf %123, %191 : vector<1x256xf32>
    %cst_15 = arith.constant 0.000000e+00 : f32
    %193 = vector.broadcast %cst_15 : f32 to vector<1x256xf32>
    %194 = vector.extract_strided_slice %6 {offsets = [0, 1], sizes = [1, 256], strides = [1, 1]} : vector<1x358xf32> to vector<1x256xf32>
    %195 = vector.broadcast %9 : f32 to vector<1x256xf32>
    %196 = arith.mulf %195, %194 : vector<1x256xf32>
    %197 = arith.addf %193, %196 : vector<1x256xf32>
    %198 = vector.extract_strided_slice %7 {offsets = [0, 1], sizes = [1, 256], strides = [1, 1]} : vector<1x358xf32> to vector<1x256xf32>
    %199 = vector.broadcast %58 : f32 to vector<1x256xf32>
    %200 = arith.mulf %199, %198 : vector<1x256xf32>
    %201 = arith.addf %197, %200 : vector<1x256xf32>
    %202 = vector.extract_strided_slice %6 {offsets = [0, 17], sizes = [1, 256], strides = [1, 1]} : vector<1x358xf32> to vector<1x256xf32>
    %203 = vector.broadcast %16 : f32 to vector<1x256xf32>
    %204 = arith.mulf %203, %202 : vector<1x256xf32>
    %205 = arith.addf %201, %204 : vector<1x256xf32>
    %206 = vector.extract_strided_slice %7 {offsets = [0, 17], sizes = [1, 256], strides = [1, 1]} : vector<1x358xf32> to vector<1x256xf32>
    %207 = vector.broadcast %65 : f32 to vector<1x256xf32>
    %208 = arith.mulf %207, %206 : vector<1x256xf32>
    %209 = arith.addf %205, %208 : vector<1x256xf32>
    %210 = vector.extract_strided_slice %6 {offsets = [0, 33], sizes = [1, 256], strides = [1, 1]} : vector<1x358xf32> to vector<1x256xf32>
    %211 = vector.broadcast %23 : f32 to vector<1x256xf32>
    %212 = arith.mulf %211, %210 : vector<1x256xf32>
    %213 = arith.addf %209, %212 : vector<1x256xf32>
    %214 = vector.extract_strided_slice %7 {offsets = [0, 33], sizes = [1, 256], strides = [1, 1]} : vector<1x358xf32> to vector<1x256xf32>
    %215 = vector.broadcast %72 : f32 to vector<1x256xf32>
    %216 = arith.mulf %215, %214 : vector<1x256xf32>
    %217 = arith.addf %213, %216 : vector<1x256xf32>
    %218 = vector.extract_strided_slice %6 {offsets = [0, 49], sizes = [1, 256], strides = [1, 1]} : vector<1x358xf32> to vector<1x256xf32>
    %219 = vector.broadcast %30 : f32 to vector<1x256xf32>
    %220 = arith.mulf %219, %218 : vector<1x256xf32>
    %221 = arith.addf %217, %220 : vector<1x256xf32>
    %222 = vector.extract_strided_slice %7 {offsets = [0, 49], sizes = [1, 256], strides = [1, 1]} : vector<1x358xf32> to vector<1x256xf32>
    %223 = vector.broadcast %79 : f32 to vector<1x256xf32>
    %224 = arith.mulf %223, %222 : vector<1x256xf32>
    %225 = arith.addf %221, %224 : vector<1x256xf32>
    %226 = vector.extract_strided_slice %6 {offsets = [0, 65], sizes = [1, 256], strides = [1, 1]} : vector<1x358xf32> to vector<1x256xf32>
    %227 = vector.broadcast %37 : f32 to vector<1x256xf32>
    %228 = arith.mulf %227, %226 : vector<1x256xf32>
    %229 = arith.addf %225, %228 : vector<1x256xf32>
    %230 = vector.extract_strided_slice %7 {offsets = [0, 65], sizes = [1, 256], strides = [1, 1]} : vector<1x358xf32> to vector<1x256xf32>
    %231 = vector.broadcast %86 : f32 to vector<1x256xf32>
    %232 = arith.mulf %231, %230 : vector<1x256xf32>
    %233 = arith.addf %229, %232 : vector<1x256xf32>
    %234 = vector.extract_strided_slice %6 {offsets = [0, 81], sizes = [1, 256], strides = [1, 1]} : vector<1x358xf32> to vector<1x256xf32>
    %235 = vector.broadcast %44 : f32 to vector<1x256xf32>
    %236 = arith.mulf %235, %234 : vector<1x256xf32>
    %237 = arith.addf %233, %236 : vector<1x256xf32>
    %238 = vector.extract_strided_slice %7 {offsets = [0, 81], sizes = [1, 256], strides = [1, 1]} : vector<1x358xf32> to vector<1x256xf32>
    %239 = vector.broadcast %93 : f32 to vector<1x256xf32>
    %240 = arith.mulf %239, %238 : vector<1x256xf32>
    %241 = arith.addf %237, %240 : vector<1x256xf32>
    %242 = vector.extract_strided_slice %6 {offsets = [0, 97], sizes = [1, 256], strides = [1, 1]} : vector<1x358xf32> to vector<1x256xf32>
    %243 = vector.broadcast %51 : f32 to vector<1x256xf32>
    %244 = arith.mulf %243, %242 : vector<1x256xf32>
    %245 = arith.addf %241, %244 : vector<1x256xf32>
    %246 = vector.extract_strided_slice %7 {offsets = [0, 97], sizes = [1, 256], strides = [1, 1]} : vector<1x358xf32> to vector<1x256xf32>
    %247 = vector.broadcast %100 : f32 to vector<1x256xf32>
    %248 = arith.mulf %247, %246 : vector<1x256xf32>
    %249 = arith.addf %245, %248 : vector<1x256xf32>
    %c-2_i32 = arith.constant -2 : i32
    %250 = vector.broadcast %c-2_i32 : i32 to vector<1x256xi32>
    %251 = arith.addi %122, %250 : vector<1x256xi32>
    %c0_i32_16 = arith.constant 0 : i32
    %252 = vector.broadcast %c0_i32_16 : i32 to vector<1x256xi32>
    %253 = arith.cmpi sge, %251, %252 : vector<1x256xi32>
    %c-2_i32_17 = arith.constant -2 : i32
    %254 = vector.broadcast %c-2_i32_17 : i32 to vector<1x256xi32>
    %255 = arith.addi %122, %254 : vector<1x256xi32>
    %c16_i32_18 = arith.constant 16 : i32
    %256 = vector.broadcast %c16_i32_18 : i32 to vector<1x256xi32>
    %257 = arith.cmpi slt, %255, %256 : vector<1x256xi32>
    %258 = arith.andi %253, %257 : vector<1x256xi1>
    %cst_19 = arith.constant 0.000000e+00 : f32
    %259 = vector.broadcast %cst_19 : f32 to vector<1x256xf32>
    %260 = arith.select %258, %249, %259 : vector<1x256xi1>, vector<1x256xf32>
    %261 = arith.addf %192, %260 : vector<1x256xf32>
    %cst_20 = arith.constant 0.000000e+00 : f32
    %262 = vector.broadcast %cst_20 : f32 to vector<1x256xf32>
    %263 = vector.extract_strided_slice %6 {offsets = [0, 2], sizes = [1, 256], strides = [1, 1]} : vector<1x358xf32> to vector<1x256xf32>
    %264 = vector.broadcast %10 : f32 to vector<1x256xf32>
    %265 = arith.mulf %264, %263 : vector<1x256xf32>
    %266 = arith.addf %262, %265 : vector<1x256xf32>
    %267 = vector.extract_strided_slice %7 {offsets = [0, 2], sizes = [1, 256], strides = [1, 1]} : vector<1x358xf32> to vector<1x256xf32>
    %268 = vector.broadcast %59 : f32 to vector<1x256xf32>
    %269 = arith.mulf %268, %267 : vector<1x256xf32>
    %270 = arith.addf %266, %269 : vector<1x256xf32>
    %271 = vector.extract_strided_slice %6 {offsets = [0, 18], sizes = [1, 256], strides = [1, 1]} : vector<1x358xf32> to vector<1x256xf32>
    %272 = vector.broadcast %17 : f32 to vector<1x256xf32>
    %273 = arith.mulf %272, %271 : vector<1x256xf32>
    %274 = arith.addf %270, %273 : vector<1x256xf32>
    %275 = vector.extract_strided_slice %7 {offsets = [0, 18], sizes = [1, 256], strides = [1, 1]} : vector<1x358xf32> to vector<1x256xf32>
    %276 = vector.broadcast %66 : f32 to vector<1x256xf32>
    %277 = arith.mulf %276, %275 : vector<1x256xf32>
    %278 = arith.addf %274, %277 : vector<1x256xf32>
    %279 = vector.extract_strided_slice %6 {offsets = [0, 34], sizes = [1, 256], strides = [1, 1]} : vector<1x358xf32> to vector<1x256xf32>
    %280 = vector.broadcast %24 : f32 to vector<1x256xf32>
    %281 = arith.mulf %280, %279 : vector<1x256xf32>
    %282 = arith.addf %278, %281 : vector<1x256xf32>
    %283 = vector.extract_strided_slice %7 {offsets = [0, 34], sizes = [1, 256], strides = [1, 1]} : vector<1x358xf32> to vector<1x256xf32>
    %284 = vector.broadcast %73 : f32 to vector<1x256xf32>
    %285 = arith.mulf %284, %283 : vector<1x256xf32>
    %286 = arith.addf %282, %285 : vector<1x256xf32>
    %287 = vector.extract_strided_slice %6 {offsets = [0, 50], sizes = [1, 256], strides = [1, 1]} : vector<1x358xf32> to vector<1x256xf32>
    %288 = vector.broadcast %31 : f32 to vector<1x256xf32>
    %289 = arith.mulf %288, %287 : vector<1x256xf32>
    %290 = arith.addf %286, %289 : vector<1x256xf32>
    %291 = vector.extract_strided_slice %7 {offsets = [0, 50], sizes = [1, 256], strides = [1, 1]} : vector<1x358xf32> to vector<1x256xf32>
    %292 = vector.broadcast %80 : f32 to vector<1x256xf32>
    %293 = arith.mulf %292, %291 : vector<1x256xf32>
    %294 = arith.addf %290, %293 : vector<1x256xf32>
    %295 = vector.extract_strided_slice %6 {offsets = [0, 66], sizes = [1, 256], strides = [1, 1]} : vector<1x358xf32> to vector<1x256xf32>
    %296 = vector.broadcast %38 : f32 to vector<1x256xf32>
    %297 = arith.mulf %296, %295 : vector<1x256xf32>
    %298 = arith.addf %294, %297 : vector<1x256xf32>
    %299 = vector.extract_strided_slice %7 {offsets = [0, 66], sizes = [1, 256], strides = [1, 1]} : vector<1x358xf32> to vector<1x256xf32>
    %300 = vector.broadcast %87 : f32 to vector<1x256xf32>
    %301 = arith.mulf %300, %299 : vector<1x256xf32>
    %302 = arith.addf %298, %301 : vector<1x256xf32>
    %303 = vector.extract_strided_slice %6 {offsets = [0, 82], sizes = [1, 256], strides = [1, 1]} : vector<1x358xf32> to vector<1x256xf32>
    %304 = vector.broadcast %45 : f32 to vector<1x256xf32>
    %305 = arith.mulf %304, %303 : vector<1x256xf32>
    %306 = arith.addf %302, %305 : vector<1x256xf32>
    %307 = vector.extract_strided_slice %7 {offsets = [0, 82], sizes = [1, 256], strides = [1, 1]} : vector<1x358xf32> to vector<1x256xf32>
    %308 = vector.broadcast %94 : f32 to vector<1x256xf32>
    %309 = arith.mulf %308, %307 : vector<1x256xf32>
    %310 = arith.addf %306, %309 : vector<1x256xf32>
    %311 = vector.extract_strided_slice %6 {offsets = [0, 98], sizes = [1, 256], strides = [1, 1]} : vector<1x358xf32> to vector<1x256xf32>
    %312 = vector.broadcast %52 : f32 to vector<1x256xf32>
    %313 = arith.mulf %312, %311 : vector<1x256xf32>
    %314 = arith.addf %310, %313 : vector<1x256xf32>
    %315 = vector.extract_strided_slice %7 {offsets = [0, 98], sizes = [1, 256], strides = [1, 1]} : vector<1x358xf32> to vector<1x256xf32>
    %316 = vector.broadcast %101 : f32 to vector<1x256xf32>
    %317 = arith.mulf %316, %315 : vector<1x256xf32>
    %318 = arith.addf %314, %317 : vector<1x256xf32>
    %c-1_i32 = arith.constant -1 : i32
    %319 = vector.broadcast %c-1_i32 : i32 to vector<1x256xi32>
    %320 = arith.addi %122, %319 : vector<1x256xi32>
    %c0_i32_21 = arith.constant 0 : i32
    %321 = vector.broadcast %c0_i32_21 : i32 to vector<1x256xi32>
    %322 = arith.cmpi sge, %320, %321 : vector<1x256xi32>
    %c-1_i32_22 = arith.constant -1 : i32
    %323 = vector.broadcast %c-1_i32_22 : i32 to vector<1x256xi32>
    %324 = arith.addi %122, %323 : vector<1x256xi32>
    %c16_i32_23 = arith.constant 16 : i32
    %325 = vector.broadcast %c16_i32_23 : i32 to vector<1x256xi32>
    %326 = arith.cmpi slt, %324, %325 : vector<1x256xi32>
    %327 = arith.andi %322, %326 : vector<1x256xi1>
    %cst_24 = arith.constant 0.000000e+00 : f32
    %328 = vector.broadcast %cst_24 : f32 to vector<1x256xf32>
    %329 = arith.select %327, %318, %328 : vector<1x256xi1>, vector<1x256xf32>
    %330 = arith.addf %261, %329 : vector<1x256xf32>
    %cst_25 = arith.constant 0.000000e+00 : f32
    %331 = vector.broadcast %cst_25 : f32 to vector<1x256xf32>
    %332 = vector.extract_strided_slice %6 {offsets = [0, 3], sizes = [1, 256], strides = [1, 1]} : vector<1x358xf32> to vector<1x256xf32>
    %333 = vector.broadcast %11 : f32 to vector<1x256xf32>
    %334 = arith.mulf %333, %332 : vector<1x256xf32>
    %335 = arith.addf %331, %334 : vector<1x256xf32>
    %336 = vector.extract_strided_slice %7 {offsets = [0, 3], sizes = [1, 256], strides = [1, 1]} : vector<1x358xf32> to vector<1x256xf32>
    %337 = vector.broadcast %60 : f32 to vector<1x256xf32>
    %338 = arith.mulf %337, %336 : vector<1x256xf32>
    %339 = arith.addf %335, %338 : vector<1x256xf32>
    %340 = vector.extract_strided_slice %6 {offsets = [0, 19], sizes = [1, 256], strides = [1, 1]} : vector<1x358xf32> to vector<1x256xf32>
    %341 = vector.broadcast %18 : f32 to vector<1x256xf32>
    %342 = arith.mulf %341, %340 : vector<1x256xf32>
    %343 = arith.addf %339, %342 : vector<1x256xf32>
    %344 = vector.extract_strided_slice %7 {offsets = [0, 19], sizes = [1, 256], strides = [1, 1]} : vector<1x358xf32> to vector<1x256xf32>
    %345 = vector.broadcast %67 : f32 to vector<1x256xf32>
    %346 = arith.mulf %345, %344 : vector<1x256xf32>
    %347 = arith.addf %343, %346 : vector<1x256xf32>
    %348 = vector.extract_strided_slice %6 {offsets = [0, 35], sizes = [1, 256], strides = [1, 1]} : vector<1x358xf32> to vector<1x256xf32>
    %349 = vector.broadcast %25 : f32 to vector<1x256xf32>
    %350 = arith.mulf %349, %348 : vector<1x256xf32>
    %351 = arith.addf %347, %350 : vector<1x256xf32>
    %352 = vector.extract_strided_slice %7 {offsets = [0, 35], sizes = [1, 256], strides = [1, 1]} : vector<1x358xf32> to vector<1x256xf32>
    %353 = vector.broadcast %74 : f32 to vector<1x256xf32>
    %354 = arith.mulf %353, %352 : vector<1x256xf32>
    %355 = arith.addf %351, %354 : vector<1x256xf32>
    %356 = vector.extract_strided_slice %6 {offsets = [0, 51], sizes = [1, 256], strides = [1, 1]} : vector<1x358xf32> to vector<1x256xf32>
    %357 = vector.broadcast %32 : f32 to vector<1x256xf32>
    %358 = arith.mulf %357, %356 : vector<1x256xf32>
    %359 = arith.addf %355, %358 : vector<1x256xf32>
    %360 = vector.extract_strided_slice %7 {offsets = [0, 51], sizes = [1, 256], strides = [1, 1]} : vector<1x358xf32> to vector<1x256xf32>
    %361 = vector.broadcast %81 : f32 to vector<1x256xf32>
    %362 = arith.mulf %361, %360 : vector<1x256xf32>
    %363 = arith.addf %359, %362 : vector<1x256xf32>
    %364 = vector.extract_strided_slice %6 {offsets = [0, 67], sizes = [1, 256], strides = [1, 1]} : vector<1x358xf32> to vector<1x256xf32>
    %365 = vector.broadcast %39 : f32 to vector<1x256xf32>
    %366 = arith.mulf %365, %364 : vector<1x256xf32>
    %367 = arith.addf %363, %366 : vector<1x256xf32>
    %368 = vector.extract_strided_slice %7 {offsets = [0, 67], sizes = [1, 256], strides = [1, 1]} : vector<1x358xf32> to vector<1x256xf32>
    %369 = vector.broadcast %88 : f32 to vector<1x256xf32>
    %370 = arith.mulf %369, %368 : vector<1x256xf32>
    %371 = arith.addf %367, %370 : vector<1x256xf32>
    %372 = vector.extract_strided_slice %6 {offsets = [0, 83], sizes = [1, 256], strides = [1, 1]} : vector<1x358xf32> to vector<1x256xf32>
    %373 = vector.broadcast %46 : f32 to vector<1x256xf32>
    %374 = arith.mulf %373, %372 : vector<1x256xf32>
    %375 = arith.addf %371, %374 : vector<1x256xf32>
    %376 = vector.extract_strided_slice %7 {offsets = [0, 83], sizes = [1, 256], strides = [1, 1]} : vector<1x358xf32> to vector<1x256xf32>
    %377 = vector.broadcast %95 : f32 to vector<1x256xf32>
    %378 = arith.mulf %377, %376 : vector<1x256xf32>
    %379 = arith.addf %375, %378 : vector<1x256xf32>
    %380 = vector.extract_strided_slice %6 {offsets = [0, 99], sizes = [1, 256], strides = [1, 1]} : vector<1x358xf32> to vector<1x256xf32>
    %381 = vector.broadcast %53 : f32 to vector<1x256xf32>
    %382 = arith.mulf %381, %380 : vector<1x256xf32>
    %383 = arith.addf %379, %382 : vector<1x256xf32>
    %384 = vector.extract_strided_slice %7 {offsets = [0, 99], sizes = [1, 256], strides = [1, 1]} : vector<1x358xf32> to vector<1x256xf32>
    %385 = vector.broadcast %102 : f32 to vector<1x256xf32>
    %386 = arith.mulf %385, %384 : vector<1x256xf32>
    %387 = arith.addf %383, %386 : vector<1x256xf32>
    %c0_i32_26 = arith.constant 0 : i32
    %388 = vector.broadcast %c0_i32_26 : i32 to vector<1x256xi32>
    %389 = arith.addi %122, %388 : vector<1x256xi32>
    %c0_i32_27 = arith.constant 0 : i32
    %390 = vector.broadcast %c0_i32_27 : i32 to vector<1x256xi32>
    %391 = arith.cmpi sge, %389, %390 : vector<1x256xi32>
    %c0_i32_28 = arith.constant 0 : i32
    %392 = vector.broadcast %c0_i32_28 : i32 to vector<1x256xi32>
    %393 = arith.addi %122, %392 : vector<1x256xi32>
    %c16_i32_29 = arith.constant 16 : i32
    %394 = vector.broadcast %c16_i32_29 : i32 to vector<1x256xi32>
    %395 = arith.cmpi slt, %393, %394 : vector<1x256xi32>
    %396 = arith.andi %391, %395 : vector<1x256xi1>
    %cst_30 = arith.constant 0.000000e+00 : f32
    %397 = vector.broadcast %cst_30 : f32 to vector<1x256xf32>
    %398 = arith.select %396, %387, %397 : vector<1x256xi1>, vector<1x256xf32>
    %399 = arith.addf %330, %398 : vector<1x256xf32>
    %cst_31 = arith.constant 0.000000e+00 : f32
    %400 = vector.broadcast %cst_31 : f32 to vector<1x256xf32>
    %401 = vector.extract_strided_slice %6 {offsets = [0, 4], sizes = [1, 256], strides = [1, 1]} : vector<1x358xf32> to vector<1x256xf32>
    %402 = vector.broadcast %12 : f32 to vector<1x256xf32>
    %403 = arith.mulf %402, %401 : vector<1x256xf32>
    %404 = arith.addf %400, %403 : vector<1x256xf32>
    %405 = vector.extract_strided_slice %7 {offsets = [0, 4], sizes = [1, 256], strides = [1, 1]} : vector<1x358xf32> to vector<1x256xf32>
    %406 = vector.broadcast %61 : f32 to vector<1x256xf32>
    %407 = arith.mulf %406, %405 : vector<1x256xf32>
    %408 = arith.addf %404, %407 : vector<1x256xf32>
    %409 = vector.extract_strided_slice %6 {offsets = [0, 20], sizes = [1, 256], strides = [1, 1]} : vector<1x358xf32> to vector<1x256xf32>
    %410 = vector.broadcast %19 : f32 to vector<1x256xf32>
    %411 = arith.mulf %410, %409 : vector<1x256xf32>
    %412 = arith.addf %408, %411 : vector<1x256xf32>
    %413 = vector.extract_strided_slice %7 {offsets = [0, 20], sizes = [1, 256], strides = [1, 1]} : vector<1x358xf32> to vector<1x256xf32>
    %414 = vector.broadcast %68 : f32 to vector<1x256xf32>
    %415 = arith.mulf %414, %413 : vector<1x256xf32>
    %416 = arith.addf %412, %415 : vector<1x256xf32>
    %417 = vector.extract_strided_slice %6 {offsets = [0, 36], sizes = [1, 256], strides = [1, 1]} : vector<1x358xf32> to vector<1x256xf32>
    %418 = vector.broadcast %26 : f32 to vector<1x256xf32>
    %419 = arith.mulf %418, %417 : vector<1x256xf32>
    %420 = arith.addf %416, %419 : vector<1x256xf32>
    %421 = vector.extract_strided_slice %7 {offsets = [0, 36], sizes = [1, 256], strides = [1, 1]} : vector<1x358xf32> to vector<1x256xf32>
    %422 = vector.broadcast %75 : f32 to vector<1x256xf32>
    %423 = arith.mulf %422, %421 : vector<1x256xf32>
    %424 = arith.addf %420, %423 : vector<1x256xf32>
    %425 = vector.extract_strided_slice %6 {offsets = [0, 52], sizes = [1, 256], strides = [1, 1]} : vector<1x358xf32> to vector<1x256xf32>
    %426 = vector.broadcast %33 : f32 to vector<1x256xf32>
    %427 = arith.mulf %426, %425 : vector<1x256xf32>
    %428 = arith.addf %424, %427 : vector<1x256xf32>
    %429 = vector.extract_strided_slice %7 {offsets = [0, 52], sizes = [1, 256], strides = [1, 1]} : vector<1x358xf32> to vector<1x256xf32>
    %430 = vector.broadcast %82 : f32 to vector<1x256xf32>
    %431 = arith.mulf %430, %429 : vector<1x256xf32>
    %432 = arith.addf %428, %431 : vector<1x256xf32>
    %433 = vector.extract_strided_slice %6 {offsets = [0, 68], sizes = [1, 256], strides = [1, 1]} : vector<1x358xf32> to vector<1x256xf32>
    %434 = vector.broadcast %40 : f32 to vector<1x256xf32>
    %435 = arith.mulf %434, %433 : vector<1x256xf32>
    %436 = arith.addf %432, %435 : vector<1x256xf32>
    %437 = vector.extract_strided_slice %7 {offsets = [0, 68], sizes = [1, 256], strides = [1, 1]} : vector<1x358xf32> to vector<1x256xf32>
    %438 = vector.broadcast %89 : f32 to vector<1x256xf32>
    %439 = arith.mulf %438, %437 : vector<1x256xf32>
    %440 = arith.addf %436, %439 : vector<1x256xf32>
    %441 = vector.extract_strided_slice %6 {offsets = [0, 84], sizes = [1, 256], strides = [1, 1]} : vector<1x358xf32> to vector<1x256xf32>
    %442 = vector.broadcast %47 : f32 to vector<1x256xf32>
    %443 = arith.mulf %442, %441 : vector<1x256xf32>
    %444 = arith.addf %440, %443 : vector<1x256xf32>
    %445 = vector.extract_strided_slice %7 {offsets = [0, 84], sizes = [1, 256], strides = [1, 1]} : vector<1x358xf32> to vector<1x256xf32>
    %446 = vector.broadcast %96 : f32 to vector<1x256xf32>
    %447 = arith.mulf %446, %445 : vector<1x256xf32>
    %448 = arith.addf %444, %447 : vector<1x256xf32>
    %449 = vector.extract_strided_slice %6 {offsets = [0, 100], sizes = [1, 256], strides = [1, 1]} : vector<1x358xf32> to vector<1x256xf32>
    %450 = vector.broadcast %54 : f32 to vector<1x256xf32>
    %451 = arith.mulf %450, %449 : vector<1x256xf32>
    %452 = arith.addf %448, %451 : vector<1x256xf32>
    %453 = vector.extract_strided_slice %7 {offsets = [0, 100], sizes = [1, 256], strides = [1, 1]} : vector<1x358xf32> to vector<1x256xf32>
    %454 = vector.broadcast %103 : f32 to vector<1x256xf32>
    %455 = arith.mulf %454, %453 : vector<1x256xf32>
    %456 = arith.addf %452, %455 : vector<1x256xf32>
    %c1_i32_32 = arith.constant 1 : i32
    %457 = vector.broadcast %c1_i32_32 : i32 to vector<1x256xi32>
    %458 = arith.addi %122, %457 : vector<1x256xi32>
    %c0_i32_33 = arith.constant 0 : i32
    %459 = vector.broadcast %c0_i32_33 : i32 to vector<1x256xi32>
    %460 = arith.cmpi sge, %458, %459 : vector<1x256xi32>
    %c1_i32_34 = arith.constant 1 : i32
    %461 = vector.broadcast %c1_i32_34 : i32 to vector<1x256xi32>
    %462 = arith.addi %122, %461 : vector<1x256xi32>
    %c16_i32_35 = arith.constant 16 : i32
    %463 = vector.broadcast %c16_i32_35 : i32 to vector<1x256xi32>
    %464 = arith.cmpi slt, %462, %463 : vector<1x256xi32>
    %465 = arith.andi %460, %464 : vector<1x256xi1>
    %cst_36 = arith.constant 0.000000e+00 : f32
    %466 = vector.broadcast %cst_36 : f32 to vector<1x256xf32>
    %467 = arith.select %465, %456, %466 : vector<1x256xi1>, vector<1x256xf32>
    %468 = arith.addf %399, %467 : vector<1x256xf32>
    %cst_37 = arith.constant 0.000000e+00 : f32
    %469 = vector.broadcast %cst_37 : f32 to vector<1x256xf32>
    %470 = vector.extract_strided_slice %6 {offsets = [0, 5], sizes = [1, 256], strides = [1, 1]} : vector<1x358xf32> to vector<1x256xf32>
    %471 = vector.broadcast %13 : f32 to vector<1x256xf32>
    %472 = arith.mulf %471, %470 : vector<1x256xf32>
    %473 = arith.addf %469, %472 : vector<1x256xf32>
    %474 = vector.extract_strided_slice %7 {offsets = [0, 5], sizes = [1, 256], strides = [1, 1]} : vector<1x358xf32> to vector<1x256xf32>
    %475 = vector.broadcast %62 : f32 to vector<1x256xf32>
    %476 = arith.mulf %475, %474 : vector<1x256xf32>
    %477 = arith.addf %473, %476 : vector<1x256xf32>
    %478 = vector.extract_strided_slice %6 {offsets = [0, 21], sizes = [1, 256], strides = [1, 1]} : vector<1x358xf32> to vector<1x256xf32>
    %479 = vector.broadcast %20 : f32 to vector<1x256xf32>
    %480 = arith.mulf %479, %478 : vector<1x256xf32>
    %481 = arith.addf %477, %480 : vector<1x256xf32>
    %482 = vector.extract_strided_slice %7 {offsets = [0, 21], sizes = [1, 256], strides = [1, 1]} : vector<1x358xf32> to vector<1x256xf32>
    %483 = vector.broadcast %69 : f32 to vector<1x256xf32>
    %484 = arith.mulf %483, %482 : vector<1x256xf32>
    %485 = arith.addf %481, %484 : vector<1x256xf32>
    %486 = vector.extract_strided_slice %6 {offsets = [0, 37], sizes = [1, 256], strides = [1, 1]} : vector<1x358xf32> to vector<1x256xf32>
    %487 = vector.broadcast %27 : f32 to vector<1x256xf32>
    %488 = arith.mulf %487, %486 : vector<1x256xf32>
    %489 = arith.addf %485, %488 : vector<1x256xf32>
    %490 = vector.extract_strided_slice %7 {offsets = [0, 37], sizes = [1, 256], strides = [1, 1]} : vector<1x358xf32> to vector<1x256xf32>
    %491 = vector.broadcast %76 : f32 to vector<1x256xf32>
    %492 = arith.mulf %491, %490 : vector<1x256xf32>
    %493 = arith.addf %489, %492 : vector<1x256xf32>
    %494 = vector.extract_strided_slice %6 {offsets = [0, 53], sizes = [1, 256], strides = [1, 1]} : vector<1x358xf32> to vector<1x256xf32>
    %495 = vector.broadcast %34 : f32 to vector<1x256xf32>
    %496 = arith.mulf %495, %494 : vector<1x256xf32>
    %497 = arith.addf %493, %496 : vector<1x256xf32>
    %498 = vector.extract_strided_slice %7 {offsets = [0, 53], sizes = [1, 256], strides = [1, 1]} : vector<1x358xf32> to vector<1x256xf32>
    %499 = vector.broadcast %83 : f32 to vector<1x256xf32>
    %500 = arith.mulf %499, %498 : vector<1x256xf32>
    %501 = arith.addf %497, %500 : vector<1x256xf32>
    %502 = vector.extract_strided_slice %6 {offsets = [0, 69], sizes = [1, 256], strides = [1, 1]} : vector<1x358xf32> to vector<1x256xf32>
    %503 = vector.broadcast %41 : f32 to vector<1x256xf32>
    %504 = arith.mulf %503, %502 : vector<1x256xf32>
    %505 = arith.addf %501, %504 : vector<1x256xf32>
    %506 = vector.extract_strided_slice %7 {offsets = [0, 69], sizes = [1, 256], strides = [1, 1]} : vector<1x358xf32> to vector<1x256xf32>
    %507 = vector.broadcast %90 : f32 to vector<1x256xf32>
    %508 = arith.mulf %507, %506 : vector<1x256xf32>
    %509 = arith.addf %505, %508 : vector<1x256xf32>
    %510 = vector.extract_strided_slice %6 {offsets = [0, 85], sizes = [1, 256], strides = [1, 1]} : vector<1x358xf32> to vector<1x256xf32>
    %511 = vector.broadcast %48 : f32 to vector<1x256xf32>
    %512 = arith.mulf %511, %510 : vector<1x256xf32>
    %513 = arith.addf %509, %512 : vector<1x256xf32>
    %514 = vector.extract_strided_slice %7 {offsets = [0, 85], sizes = [1, 256], strides = [1, 1]} : vector<1x358xf32> to vector<1x256xf32>
    %515 = vector.broadcast %97 : f32 to vector<1x256xf32>
    %516 = arith.mulf %515, %514 : vector<1x256xf32>
    %517 = arith.addf %513, %516 : vector<1x256xf32>
    %518 = vector.extract_strided_slice %6 {offsets = [0, 101], sizes = [1, 256], strides = [1, 1]} : vector<1x358xf32> to vector<1x256xf32>
    %519 = vector.broadcast %55 : f32 to vector<1x256xf32>
    %520 = arith.mulf %519, %518 : vector<1x256xf32>
    %521 = arith.addf %517, %520 : vector<1x256xf32>
    %522 = vector.extract_strided_slice %7 {offsets = [0, 101], sizes = [1, 256], strides = [1, 1]} : vector<1x358xf32> to vector<1x256xf32>
    %523 = vector.broadcast %104 : f32 to vector<1x256xf32>
    %524 = arith.mulf %523, %522 : vector<1x256xf32>
    %525 = arith.addf %521, %524 : vector<1x256xf32>
    %c2_i32 = arith.constant 2 : i32
    %526 = vector.broadcast %c2_i32 : i32 to vector<1x256xi32>
    %527 = arith.addi %122, %526 : vector<1x256xi32>
    %c0_i32_38 = arith.constant 0 : i32
    %528 = vector.broadcast %c0_i32_38 : i32 to vector<1x256xi32>
    %529 = arith.cmpi sge, %527, %528 : vector<1x256xi32>
    %c2_i32_39 = arith.constant 2 : i32
    %530 = vector.broadcast %c2_i32_39 : i32 to vector<1x256xi32>
    %531 = arith.addi %122, %530 : vector<1x256xi32>
    %c16_i32_40 = arith.constant 16 : i32
    %532 = vector.broadcast %c16_i32_40 : i32 to vector<1x256xi32>
    %533 = arith.cmpi slt, %531, %532 : vector<1x256xi32>
    %534 = arith.andi %529, %533 : vector<1x256xi1>
    %cst_41 = arith.constant 0.000000e+00 : f32
    %535 = vector.broadcast %cst_41 : f32 to vector<1x256xf32>
    %536 = arith.select %534, %525, %535 : vector<1x256xi1>, vector<1x256xf32>
    %537 = arith.addf %468, %536 : vector<1x256xf32>
    %cst_42 = arith.constant 0.000000e+00 : f32
    %538 = vector.broadcast %cst_42 : f32 to vector<1x256xf32>
    %539 = vector.extract_strided_slice %6 {offsets = [0, 6], sizes = [1, 256], strides = [1, 1]} : vector<1x358xf32> to vector<1x256xf32>
    %540 = vector.broadcast %14 : f32 to vector<1x256xf32>
    %541 = arith.mulf %540, %539 : vector<1x256xf32>
    %542 = arith.addf %538, %541 : vector<1x256xf32>
    %543 = vector.extract_strided_slice %7 {offsets = [0, 6], sizes = [1, 256], strides = [1, 1]} : vector<1x358xf32> to vector<1x256xf32>
    %544 = vector.broadcast %63 : f32 to vector<1x256xf32>
    %545 = arith.mulf %544, %543 : vector<1x256xf32>
    %546 = arith.addf %542, %545 : vector<1x256xf32>
    %547 = vector.extract_strided_slice %6 {offsets = [0, 22], sizes = [1, 256], strides = [1, 1]} : vector<1x358xf32> to vector<1x256xf32>
    %548 = vector.broadcast %21 : f32 to vector<1x256xf32>
    %549 = arith.mulf %548, %547 : vector<1x256xf32>
    %550 = arith.addf %546, %549 : vector<1x256xf32>
    %551 = vector.extract_strided_slice %7 {offsets = [0, 22], sizes = [1, 256], strides = [1, 1]} : vector<1x358xf32> to vector<1x256xf32>
    %552 = vector.broadcast %70 : f32 to vector<1x256xf32>
    %553 = arith.mulf %552, %551 : vector<1x256xf32>
    %554 = arith.addf %550, %553 : vector<1x256xf32>
    %555 = vector.extract_strided_slice %6 {offsets = [0, 38], sizes = [1, 256], strides = [1, 1]} : vector<1x358xf32> to vector<1x256xf32>
    %556 = vector.broadcast %28 : f32 to vector<1x256xf32>
    %557 = arith.mulf %556, %555 : vector<1x256xf32>
    %558 = arith.addf %554, %557 : vector<1x256xf32>
    %559 = vector.extract_strided_slice %7 {offsets = [0, 38], sizes = [1, 256], strides = [1, 1]} : vector<1x358xf32> to vector<1x256xf32>
    %560 = vector.broadcast %77 : f32 to vector<1x256xf32>
    %561 = arith.mulf %560, %559 : vector<1x256xf32>
    %562 = arith.addf %558, %561 : vector<1x256xf32>
    %563 = vector.extract_strided_slice %6 {offsets = [0, 54], sizes = [1, 256], strides = [1, 1]} : vector<1x358xf32> to vector<1x256xf32>
    %564 = vector.broadcast %35 : f32 to vector<1x256xf32>
    %565 = arith.mulf %564, %563 : vector<1x256xf32>
    %566 = arith.addf %562, %565 : vector<1x256xf32>
    %567 = vector.extract_strided_slice %7 {offsets = [0, 54], sizes = [1, 256], strides = [1, 1]} : vector<1x358xf32> to vector<1x256xf32>
    %568 = vector.broadcast %84 : f32 to vector<1x256xf32>
    %569 = arith.mulf %568, %567 : vector<1x256xf32>
    %570 = arith.addf %566, %569 : vector<1x256xf32>
    %571 = vector.extract_strided_slice %6 {offsets = [0, 70], sizes = [1, 256], strides = [1, 1]} : vector<1x358xf32> to vector<1x256xf32>
    %572 = vector.broadcast %42 : f32 to vector<1x256xf32>
    %573 = arith.mulf %572, %571 : vector<1x256xf32>
    %574 = arith.addf %570, %573 : vector<1x256xf32>
    %575 = vector.extract_strided_slice %7 {offsets = [0, 70], sizes = [1, 256], strides = [1, 1]} : vector<1x358xf32> to vector<1x256xf32>
    %576 = vector.broadcast %91 : f32 to vector<1x256xf32>
    %577 = arith.mulf %576, %575 : vector<1x256xf32>
    %578 = arith.addf %574, %577 : vector<1x256xf32>
    %579 = vector.extract_strided_slice %6 {offsets = [0, 86], sizes = [1, 256], strides = [1, 1]} : vector<1x358xf32> to vector<1x256xf32>
    %580 = vector.broadcast %49 : f32 to vector<1x256xf32>
    %581 = arith.mulf %580, %579 : vector<1x256xf32>
    %582 = arith.addf %578, %581 : vector<1x256xf32>
    %583 = vector.extract_strided_slice %7 {offsets = [0, 86], sizes = [1, 256], strides = [1, 1]} : vector<1x358xf32> to vector<1x256xf32>
    %584 = vector.broadcast %98 : f32 to vector<1x256xf32>
    %585 = arith.mulf %584, %583 : vector<1x256xf32>
    %586 = arith.addf %582, %585 : vector<1x256xf32>
    %587 = vector.extract_strided_slice %6 {offsets = [0, 102], sizes = [1, 256], strides = [1, 1]} : vector<1x358xf32> to vector<1x256xf32>
    %588 = vector.broadcast %56 : f32 to vector<1x256xf32>
    %589 = arith.mulf %588, %587 : vector<1x256xf32>
    %590 = arith.addf %586, %589 : vector<1x256xf32>
    %591 = vector.extract_strided_slice %7 {offsets = [0, 102], sizes = [1, 256], strides = [1, 1]} : vector<1x358xf32> to vector<1x256xf32>
    %592 = vector.broadcast %105 : f32 to vector<1x256xf32>
    %593 = arith.mulf %592, %591 : vector<1x256xf32>
    %594 = arith.addf %590, %593 : vector<1x256xf32>
    %c3_i32 = arith.constant 3 : i32
    %595 = vector.broadcast %c3_i32 : i32 to vector<1x256xi32>
    %596 = arith.addi %122, %595 : vector<1x256xi32>
    %c0_i32_43 = arith.constant 0 : i32
    %597 = vector.broadcast %c0_i32_43 : i32 to vector<1x256xi32>
    %598 = arith.cmpi sge, %596, %597 : vector<1x256xi32>
    %c3_i32_44 = arith.constant 3 : i32
    %599 = vector.broadcast %c3_i32_44 : i32 to vector<1x256xi32>
    %600 = arith.addi %122, %599 : vector<1x256xi32>
    %c16_i32_45 = arith.constant 16 : i32
    %601 = vector.broadcast %c16_i32_45 : i32 to vector<1x256xi32>
    %602 = arith.cmpi slt, %600, %601 : vector<1x256xi32>
    %603 = arith.andi %598, %602 : vector<1x256xi1>
    %cst_46 = arith.constant 0.000000e+00 : f32
    %604 = vector.broadcast %cst_46 : f32 to vector<1x256xf32>
    %605 = arith.select %603, %594, %604 : vector<1x256xi1>, vector<1x256xf32>
    %606 = arith.addf %537, %605 : vector<1x256xf32>
    %607 = arith.negf %606 : vector<1x256xf32>
    %608 = math.exp %607 : vector<1x256xf32>
    %cst_47 = arith.constant 1.000000e+00 : f32
    %609 = vector.broadcast %cst_47 : f32 to vector<1x256xf32>
    %610 = arith.addf %609, %608 : vector<1x256xf32>
    %611 = arith.divf %609, %610 : vector<1x256xf32>
    %c0_48 = arith.constant 0 : index
    %c0_49 = arith.constant 0 : index
    %c0_50 = arith.constant 0 : index
    %612 = vector.load %arg3[%c0_48, %c0_49, %c0_50] : memref<1x1x256xf32, #tpu.memory_space<vmem>>, vector<1x1x256xf32>
    %613 = vector.shape_cast %612 : vector<1x1x256xf32> to vector<1x256xf32>
    %614 = vector.shape_cast %611 : vector<1x256xf32> to vector<1x1x256xf32>
    tpu.vector_store %arg3[%c0_48, %c0_49, %c0_50], %614 {strides = array<i32>} : memref<1x1x256xf32, #tpu.memory_space<vmem>>, vector<1x1x256xf32>,
    return
  }
  func.func @transform_0(%arg0: i32) -> i32 {
    %c0_i32 = arith.constant 0 : i32
    %c0_i32_0 = arith.constant 0 : i32
    return %c0_i32 : i32
  }
  func.func @transform_1(%arg0: i32) -> (i32, i32, i32) {
    %c0_i32 = arith.constant 0 : i32
    %c0_i32_0 = arith.constant 0 : i32
    %c0_i32_1 = arith.constant 0 : i32
    return %arg0, %c0_i32, %c0_i32_0 : i32, i32, i32
  }
  func.func @transform_2(%arg0: i32) -> (i32, i32, i32) {
    %c0_i32 = arith.constant 0 : i32
    %c0_i32_0 = arith.constant 0 : i32
    %c0_i32_1 = arith.constant 0 : i32
    return %arg0, %c0_i32, %c0_i32_0 : i32, i32, i32
  }
}

</mosaic_0001>

<llo_original>
// kernel: tpu_custom_call.1
$region0: #{tpu_custom_call.1}
  #allocation0 [shape = 'u32[]', space=smem, size = 0x4, offset = 0x4, fixed_abs, tag = 'smem constant byte address 0x4 - core index']
  #allocation1 [shape = 'u32[72,128]{1,0:T(1,128)}', space=vmem, size = 0x9000, scoped, tag = 'internal scratch']
  %s0 = inlined_call_operand.hbm [shape: f32[98], index: 0, kind: input, shape index: {}]
  %s1 = inlined_call_operand.hbm [shape: f32[2,4,256], index: 1, kind: input, shape index: {}]
  %s2 = inlined_call_operand.hbm [shape: f32[2,1,256], index: 2, kind: output, shape index: {}]
  %s3 = sld [smem:[#allocation0]]
  $region49: #{tpu_custom_call.1} parent=0
    _
  %s5 = ssub.s32 1, %s3
  %s6 = scalar_select 0, %s5, %s3
  $region1: #{tpu_custom_call.1} parent=0
    #allocation2 [shape = 'u8[512]{0}', space=smem, size = 0x200, scoped, tag = 'input window, operand 0, single buffered']
    #allocation3 [shape = 's32[2]{0}', space=sflag, size = 0x8, scoped, tag = 'scoped memory for tpu_custom_call.1']
    #allocation4 [shape = 's32[2]{0}', space=sflag, size = 0x8, scoped, tag = 'scoped memory for tpu_custom_call.1']
    #allocation5 [shape = 's32[2]{0}', space=sflag, size = 0x8, scoped, tag = 'scoped memory for tpu_custom_call.1']
    #allocation6 [shape = 'u8[8192]{0}', space=vmem, size = 0x2000, scoped, tag = 'input window, operand 1']
    #allocation7 [shape = 'u8[2048]{0}', space=vmem, size = 0x800, scoped, tag = 'output window, operand 0']
    %7 = vsyncpa [#allocation5], 0
    %8 = vsyncpa [#allocation3], 0
    %s9 = scalar_lea.sflag [#allocation3], 1
    %10 = vsyncpa %s9, 0
    %11 = vsyncpa [#allocation4], 0
    %s12 = scalar_lea.sflag [#allocation4], 1
    %13 = vsyncpa %s12, 0
    loop: start=0, step=1, limit=4
    $region2: #{tpu_custom_call.1} parent=1 // loop_pre_header
      _
    $region3: #{tpu_custom_call.1} parent=1 // loop_header
      %s15 = sphi 0, %s19
      %p16 = scmp.ge.s32.totalorder %s15, 4
      %s23 = sphi 0, %s23
      %s25 = sphi 0, %s23
      %s26 = sphi 0, %s25
      %s40 = sphi 0, %s26
      %s46 = sphi 0, %s48
      %s49 = sphi 0, %s46
      %s50 = sphi 0, %s49
      %s66 = sphi 0, %s50
      %s72 = sphi 0, %s74
      %s75 = sphi 0, %s72
      %s76 = sphi 0, %s75
      %s92 = sphi 0, %s76
    $region4: #{tpu_custom_call.1} parent=1 // loop_header_branch
      %18 = sbr.rel (%p16) target = $region8
    $region5: #{tpu_custom_call.1} parent=1 // loop_body
      %s20 = ssub.s32 %s15, 1
      %s21 = ssub.s32 %s15, 2
      %s22 = sadd.s32 %s15, 1
      %s24 = sadd.s32 %s23, 1
      %p27 = scmp.eq.s32.totalorder %s15, 1
      %p28 = scmp.ne.s32.totalorder %s23, %s25
      %p29 = scmp.eq.s32.totalorder %s15, 0
      %p30 = por %p28, %p29
      %p31 = scmp.ne.s32.totalorder %s23, %s25
      %p32 = scmp.eq.s32.totalorder %s20, 1
      %p33 = por %p31, %p32
      %p34 = scmp.ne.s32.totalorder %s25, %s26
      %p35 = scmp.eq.s32.totalorder %s20, 0
      %p36 = por %p34, %p35
      %p37 = scmp.ne.s32.totalorder %s25, %s26
      %p38 = scmp.eq.s32.totalorder %s21, 1
      %p39 = por %p37, %p38
      %p41 = scmp.ne.s32.totalorder %s26, %s40
      %p42 = scmp.eq.s32.totalorder %s21, 0
      %p43 = por %p41, %p42
      %s44 = ssub.s32 %s15, %s22
      %p45 = scmp.eq.s32.totalorder %s44, 0
      %s47 = sadd.s32 %s46, 1
      %s48 = scalar_select %p45, %s46, %s47
      %p51 = pneg %p45
      %p52 = scmp.eq.s32.totalorder %s15, 1
      %p53 = por %p51, %p52
      %p54 = scmp.ne.s32.totalorder %s46, %s49
      %p55 = scmp.eq.s32.totalorder %s15, 0
      %p56 = por %p54, %p55
      %p57 = scmp.ne.s32.totalorder %s46, %s49
      %p58 = scmp.eq.s32.totalorder %s20, 1
      %p59 = por %p57, %p58
      %p60 = scmp.ne.s32.totalorder %s49, %s50
      %p61 = scmp.eq.s32.totalorder %s20, 0
      %p62 = por %p60, %p61
      %p63 = scmp.ne.s32.totalorder %s49, %s50
      %p64 = scmp.eq.s32.totalorder %s21, 1
      %p65 = por %p63, %p64
      %p67 = scmp.ne.s32.totalorder %s50, %s66
      %p68 = scmp.eq.s32.totalorder %s21, 0
      %p69 = por %p67, %p68
      %s70 = ssub.s32 %s15, %s22
      %p71 = scmp.eq.s32.totalorder %s70, 0
      %s73 = sadd.s32 %s72, 1
      %s74 = scalar_select %p71, %s72, %s73
      %p77 = pneg %p71
      %p78 = scmp.eq.s32.totalorder %s15, 1
      %p79 = por %p77, %p78
      %p80 = scmp.ne.s32.totalorder %s72, %s75
      %p81 = scmp.eq.s32.totalorder %s15, 0
      %p82 = por %p80, %p81
      %p83 = scmp.ne.s32.totalorder %s72, %s75
      %p84 = scmp.eq.s32.totalorder %s20, 1
      %p85 = por %p83, %p84
      %p86 = scmp.ne.s32.totalorder %s75, %s76
      %p87 = scmp.eq.s32.totalorder %s20, 0
      %p88 = por %p86, %p87
      %p89 = scmp.ne.s32.totalorder %s75, %s76
      %p90 = scmp.eq.s32.totalorder %s21, 1
      %p91 = por %p89, %p90
      %p93 = scmp.ne.s32.totalorder %s76, %s92
      %p94 = scmp.eq.s32.totalorder %s21, 0
      %p95 = por %p93, %p94
      %p96 = scmp.le.s32.totalorder 1, %s15
      %p97 = scmp.lt.s32.totalorder %s15, 3
      %p98 = pnand %p96, %p97
      %p99 = pneg %p98
      // Predicated region
      $region9: #{tpu_custom_call.1} parent=5 // pred_check
        _
      $region10: #{tpu_custom_call.1} parent=5 // pred_check_branch
        %101 = sbr.rel (%p98) target = $region12
      $region11: #{tpu_custom_call.1} parent=5 // pred_region
        %s102 = ssub.s32 %s15, 1
        // Predicated region
        $region13: #{tpu_custom_call.1} parent=11 // pred_check
          %p103 = pneg %p36
        $region14: #{tpu_custom_call.1} parent=11 // pred_check_branch
          %105 = sbr.rel (%p103) target = $region16
        $region15: #{tpu_custom_call.1} parent=11 // pred_region
          %107 = vsyncadd [#allocation5], 0
          %s109 = sshll.u32 %s0, 4
          %s110 = int_to_ptr.hbm [resolvable:$true] %s109
          %112 = dma.hbm_to_smem %s110, 16, [#allocation2], [#allocation5]
        $region16: #{tpu_custom_call.1} parent=11 // pred_fallthru
          _
      $region12: #{tpu_custom_call.1} parent=5 // pred_fallthru
        _
      %p113 = scmp.lt.s32.totalorder %s15, 2
      // Predicated region
      $region17: #{tpu_custom_call.1} parent=5 // pred_check
        %p114 = pneg %p113
      $region18: #{tpu_custom_call.1} parent=5 // pred_check_branch
        %116 = sbr.rel (%p114) target = $region20
      $region19: #{tpu_custom_call.1} parent=5 // pred_region
        // Predicated region
        $region21: #{tpu_custom_call.1} parent=19 // pred_check
          %p117 = pneg %p56
        $region22: #{tpu_custom_call.1} parent=19 // pred_check_branch
          %119 = sbr.rel (%p117) target = $region24
        $region23: #{tpu_custom_call.1} parent=19 // pred_region
          %s120 = sand.u32 %s46, 1
          %s121 = scalar_lea.sflag [#allocation3], %s120
          %s122 = sand.u32 %s46, 1
          %s123 = smul.addr %s122, 8
          %s124 = scalar_lea.vmem [#allocation6], %s123
          %126 = vsyncadd %s121, 0
          %s127 = smul.addr %s15, 2
          %s128 = smul.addr %s127, 4
          %s129 = scalar_lea.hbm %s1, %s128
          %s131 = sshll.u32 %s129, 4
          %s132 = int_to_ptr.hbm [resolvable:$true] %s131
          %s133 = sshll.u32 %s124, 4
          %s134 = int_to_ptr.vmem [resolvable:$true] %s133
          %136 = dma.hbm_to_vmem [thread:$0]  %s132, 128, %s134, %s121
        $region24: #{tpu_custom_call.1} parent=19 // pred_fallthru
          _
      $region20: #{tpu_custom_call.1} parent=5 // pred_fallthru
        _
      %p137 = scmp.le.s32.totalorder 1, %s15
      %p138 = scmp.lt.s32.totalorder %s15, 3
      %p139 = pnand %p137, %p138
      %p140 = pneg %p139
      // Predicated region
      $region25: #{tpu_custom_call.1} parent=5 // pred_check
        _
      $region26: #{tpu_custom_call.1} parent=5 // pred_check_branch
        %142 = sbr.rel (%p139) target = $region28
      $region27: #{tpu_custom_call.1} parent=5 // pred_region
        %s143 = ssub.s32 %s15, 1
        // Predicated region
        $region29: #{tpu_custom_call.1} parent=27 // pred_check
          %p144 = pneg %p36
        $region30: #{tpu_custom_call.1} parent=27 // pred_check_branch
          %146 = sbr.rel (%p144) target = $region32
        $region31: #{tpu_custom_call.1} parent=27 // pred_region
          %148 = dma.done [#allocation5], 16
        $region32: #{tpu_custom_call.1} parent=27 // pred_fallthru
          _
        %s149 = sand.u32 %s49, 1
        %s150 = scalar_lea.sflag [#allocation3], %s149
        %s151 = sand.u32 %s49, 1
        %s152 = smul.addr %s151, 8
        %s153 = scalar_lea.vmem [#allocation6], %s152
        // Predicated region
        $region33: #{tpu_custom_call.1} parent=27 // pred_check
          %p154 = pneg %p62
        $region34: #{tpu_custom_call.1} parent=27 // pred_check_branch
          %156 = sbr.rel (%p154) target = $region36
        $region35: #{tpu_custom_call.1} parent=27 // pred_region
          %158 = dma.done %s150, 128
        $region36: #{tpu_custom_call.1} parent=27 // pred_fallthru
          _
        %159 = sfence
        %p160 = pneg %p36
        %p161 = pneg %p33
        %s162 = sand.u32 %s49, 1
        %s163 = scalar_lea.sflag [#allocation3], %s162
        %s164 = sand.u32 %s49, 1
        %s165 = smul.addr %s164, 8
        %s166 = scalar_lea.vmem [#allocation6], %s165
        %p167 = pneg %p62
        %p168 = pneg %p59
        %p169 = pneg %p88
        %p170 = pneg %p85
        %s171 = sand.u32 %s75, 1
        %s172 = scalar_lea.sflag [#allocation4], %s171
        %s173 = sand.u32 %s75, 1
        %s174 = smul.addr %s173, 2
        %s175 = scalar_lea.vmem [#allocation7], %s174
        %v176 = vld [vmem:[%s153] sm:$0xff]
        %178 = vst [vmem:[#allocation1] ss:$2 sm:$0xff] %v176
        %v179 = vld.sshfl [vmem:[#allocation1] sm:$0xff pattern:$0x75316420]
        %v180 = vld.sshfl [vmem:[#allocation1 + $0x8] sm:$0xff pattern:$0x75316420]
        %vm183 = vcmask 1043456
        %v184 = vsel %vm183, %v179, 0.0
        %v185 = vrot.slane %v184, 4
        %v186 = vadd.f32 %v184, %v185
        %v187 = vrot.slane %v186, 2
        %v188 = vadd.f32 %v186, %v187
        %v189 = vrot.slane %v188, 1
        %v190 = vadd.f32 %v188, %v189
        %v191 = vsel %vm183, %v180, 0.0
        %v192 = vrot.slane %v191, 4
        %v193 = vadd.f32 %v191, %v192
        %v194 = vrot.slane %v193, 2
        %v195 = vadd.f32 %v193, %v194
        %v196 = vrot.slane %v195, 1
        %v197 = vadd.f32 %v195, %v196
        %v198 = vrcp.pop 4.0
        %v199 = vmul.f32 4.0, %v198
        %v200 = vsub.f32 1.0, %v199
        %v201 = vmul.f32 %v198, %v200
        %v202 = vadd.f32 %v198, %v201
        %vm203 = vweird.f32 %v198
        %v204 = vsel %vm203, %v198, %v202
        %v205 = vmul.f32 %v190, %v204
        %v206 = vmul.f32 %v197, %v204
        %207 = vst [vmem:[#allocation1] ss:$2 sm:$0xff] %v176
        %v208 = vld.sshfl [vmem:[#allocation1] sm:$0xff pattern:$0x75316420]
        %v209 = vld.sshfl [vmem:[#allocation1 + $0x8] sm:$0xff pattern:$0x75316420]
        %v212 = vsel %vm183, %v208, -inf
        %v213 = vrot.slane %v212, 4
        %v214 = vmax.f32 %v212, %v213
        %v215 = vrot.slane %v214, 2
        %v216 = vmax.f32 %v214, %v215
        %v217 = vrot.slane %v216, 1
        %v218 = vmax.f32 %v216, %v217
        %v219 = vsel %vm183, %v209, -inf
        %v220 = vrot.slane %v219, 4
        %v221 = vmax.f32 %v219, %v220
        %v222 = vrot.slane %v221, 2
        %v223 = vmax.f32 %v221, %v222
        %v224 = vrot.slane %v223, 1
        %v225 = vmax.f32 %v223, %v224
        %228 = vrot.lane.b32.xlu0 %v205, 51
        %v229 = vpop.permute.xlu0 %228
        %230 = vrot.lane.b32.xlu0 %v206, 51
        %v231 = vpop.permute.xlu0 %230
        %vm232 = vcmask 416768
        %v233 = vsel %vm232, %v229, %v231
        %v237 = vsel %vm232, 0.0, %v229
        %v238 = vsel %vm232, %v231, 0.0
        %241 = vrot.lane.b32.xlu0 %v218, 51
        %v242 = vpop.permute.xlu0 %241
        %243 = vrot.lane.b32.xlu0 %v225, 51
        %v244 = vpop.permute.xlu0 %243
        %v245 = vsel %vm232, %v242, %v244
        %v249 = vsel %vm232, 0.0, %v242
        %v250 = vsel %vm232, %v244, 0.0
        %s251 = sld [smem:[#allocation2]]
        %s252 = sld [smem:[#allocation2 + $0x1]]
        %s253 = sld [smem:[#allocation2 + $0x2]]
        %s254 = sld [smem:[#allocation2 + $0x3]]
        %s255 = sld [smem:[#allocation2 + $0x4]]
        %s256 = sld [smem:[#allocation2 + $0x5]]
        %s257 = sld [smem:[#allocation2 + $0x6]]
        %s258 = sld [smem:[#allocation2 + $0x7]]
        %s259 = sld [smem:[#allocation2 + $0x8]]
        %s260 = sld [smem:[#allocation2 + $0x9]]
        %s261 = sld [smem:[#allocation2 + $0xa]]
        %s262 = sld [smem:[#allocation2 + $0xb]]
        %s263 = sld [smem:[#allocation2 + $0xc]]
        %s264 = sld [smem:[#allocation2 + $0xd]]
        %s265 = sld [smem:[#allocation2 + $0xe]]
        %s266 = sld [smem:[#allocation2 + $0xf]]
        %s267 = sld [smem:[#allocation2 + $0x10]]
        %s268 = sld [smem:[#allocation2 + $0x11]]
        %s269 = sld [smem:[#allocation2 + $0x12]]
        %s270 = sld [smem:[#allocation2 + $0x13]]
        %s271 = sld [smem:[#allocation2 + $0x14]]
        %s272 = sld [smem:[#allocation2 + $0x15]]
        %s273 = sld [smem:[#allocation2 + $0x16]]
        %s274 = sld [smem:[#allocation2 + $0x17]]
        %s275 = sld [smem:[#allocation2 + $0x18]]
        %s276 = sld [smem:[#allocation2 + $0x19]]
        %s277 = sld [smem:[#allocation2 + $0x1a]]
        %s278 = sld [smem:[#allocation2 + $0x1b]]
        %s279 = sld [smem:[#allocation2 + $0x1c]]
        %s280 = sld [smem:[#allocation2 + $0x1d]]
        %s281 = sld [smem:[#allocation2 + $0x1e]]
        %s282 = sld [smem:[#allocation2 + $0x1f]]
        %s283 = sld [smem:[#allocation2 + $0x20]]
        %s284 = sld [smem:[#allocation2 + $0x21]]
        %s285 = sld [smem:[#allocation2 + $0x22]]
        %s286 = sld [smem:[#allocation2 + $0x23]]
        %s287 = sld [smem:[#allocation2 + $0x24]]
        %s288 = sld [smem:[#allocation2 + $0x25]]
        %s289 = sld [smem:[#allocation2 + $0x26]]
        %s290 = sld [smem:[#allocation2 + $0x27]]
        %s291 = sld [smem:[#allocation2 + $0x28]]
        %s292 = sld [smem:[#allocation2 + $0x29]]
        %s293 = sld [smem:[#allocation2 + $0x2a]]
        %s294 = sld [smem:[#allocation2 + $0x2b]]
        %s295 = sld [smem:[#allocation2 + $0x2c]]
        %s296 = sld [smem:[#allocation2 + $0x2d]]
        %s297 = sld [smem:[#allocation2 + $0x2e]]
        %s298 = sld [smem:[#allocation2 + $0x2f]]
        %s299 = sld [smem:[#allocation2 + $0x30]]
        %s300 = sld [smem:[#allocation2 + $0x31]]
        %s301 = sld [smem:[#allocation2 + $0x32]]
        %s302 = sld [smem:[#allocation2 + $0x33]]
        %s303 = sld [smem:[#allocation2 + $0x34]]
        %s304 = sld [smem:[#allocation2 + $0x35]]
        %s305 = sld [smem:[#allocation2 + $0x36]]
        %s306 = sld [smem:[#allocation2 + $0x37]]
        %s307 = sld [smem:[#allocation2 + $0x38]]
        %s308 = sld [smem:[#allocation2 + $0x39]]
        %s309 = sld [smem:[#allocation2 + $0x3a]]
        %s310 = sld [smem:[#allocation2 + $0x3b]]
        %s311 = sld [smem:[#allocation2 + $0x3c]]
        %s312 = sld [smem:[#allocation2 + $0x3d]]
        %s313 = sld [smem:[#allocation2 + $0x3e]]
        %s314 = sld [smem:[#allocation2 + $0x3f]]
        %s315 = sld [smem:[#allocation2 + $0x40]]
        %s316 = sld [smem:[#allocation2 + $0x41]]
        %s317 = sld [smem:[#allocation2 + $0x42]]
        %s318 = sld [smem:[#allocation2 + $0x43]]
        %s319 = sld [smem:[#allocation2 + $0x44]]
        %s320 = sld [smem:[#allocation2 + $0x45]]
        %s321 = sld [smem:[#allocation2 + $0x46]]
        %s322 = sld [smem:[#allocation2 + $0x47]]
        %s323 = sld [smem:[#allocation2 + $0x48]]
        %s324 = sld [smem:[#allocation2 + $0x49]]
        %s325 = sld [smem:[#allocation2 + $0x4a]]
        %s326 = sld [smem:[#allocation2 + $0x4b]]
        %s327 = sld [smem:[#allocation2 + $0x4c]]
        %s328 = sld [smem:[#allocation2 + $0x4d]]
        %s329 = sld [smem:[#allocation2 + $0x4e]]
        %s330 = sld [smem:[#allocation2 + $0x4f]]
        %s331 = sld [smem:[#allocation2 + $0x50]]
        %s332 = sld [smem:[#allocation2 + $0x51]]
        %s333 = sld [smem:[#allocation2 + $0x52]]
        %s334 = sld [smem:[#allocation2 + $0x53]]
        %s335 = sld [smem:[#allocation2 + $0x54]]
        %s336 = sld [smem:[#allocation2 + $0x55]]
        %s337 = sld [smem:[#allocation2 + $0x56]]
        %s338 = sld [smem:[#allocation2 + $0x57]]
        %s339 = sld [smem:[#allocation2 + $0x58]]
        %s340 = sld [smem:[#allocation2 + $0x59]]
        %s341 = sld [smem:[#allocation2 + $0x5a]]
        %s342 = sld [smem:[#allocation2 + $0x5b]]
        %s343 = sld [smem:[#allocation2 + $0x5c]]
        %s344 = sld [smem:[#allocation2 + $0x5d]]
        %s345 = sld [smem:[#allocation2 + $0x5e]]
        %s346 = sld [smem:[#allocation2 + $0x5f]]
        %s347 = sld [smem:[#allocation2 + $0x60]]
        %s348 = sld [smem:[#allocation2 + $0x61]]
        %v349 = vlaneseq
        %v350 = vand.u32 %v349, 127
        %v351 = vadd.s32 %v350, 128
        %vm352 = vcmp.lt.s32.totalorder %v350, 0
        %v353 = vsub.s32 0, %v350
        %v354 = vsel %vm352, %v353, %v350
        %v355 = vshrl.u32 %v354, 4
        %v356 = vand.u32 %v354, 15
        %v357 = vsub.s32 0, %v356
        %v358 = vsel %vm352, %v357, %v356
        %vm359 = vcmp.lt.s32.totalorder %v351, 0
        %v360 = vsub.s32 0, %v351
        %v361 = vsel %vm359, %v360, %v351
        %v362 = vshrl.u32 %v361, 4
        %v363 = vand.u32 %v361, 15
        %v364 = vsub.s32 0, %v363
        %v365 = vsel %vm359, %v364, %v363
        %vm366 = vcmp.ne.s32.totalorder %v358, 0
        %vm367 = vcmp.ne.s32.totalorder %v365, 0
        %vm368 = vcmp.lt.s32.totalorder %v358, 0
        %vm369 = vcmp.lt.s32.totalorder %v365, 0
        %vm370 = vmand %vm368, %vm366
        %vm371 = vmand %vm369, %vm367
        %v372 = vadd.s32 %v358, 16
        %v373 = vadd.s32 %v365, 16
        %v374 = vsel %vm370, %v372, %v358
        %v375 = vsel %vm371, %v373, %v365
        %v376 = vstv %s251
        %v377 = vmul.f32 %v376, %v237
        %v378 = vmul.f32 %v376, %v233
        %v379 = vadd.f32 %v377, 0.0
        %v380 = vadd.f32 %v378, 0.0
        %v381 = vstv %s300
        %v382 = vmul.f32 %v381, %v249
        %v383 = vmul.f32 %v381, %v245
        %v384 = vadd.f32 %v379, %v382
        %v385 = vadd.f32 %v380, %v383
        %v386 = vstv %s258
        %v387 = vmul.f32 %v386, %v237
        %v388 = vmul.f32 %v386, %v233
        %v389 = vmul.f32 %v386, %v238
        %393 = vrot.lane.b32.xlu0 %v387, 112
        %v394 = vpop.permute.xlu0 %393
        %395 = vrot.lane.b32.xlu0 %v388, 112
        %v396 = vpop.permute.xlu0 %395
        %397 = vrot.lane.b32.xlu0 %v389, 112
        %v398 = vpop.permute.xlu0 %397
        %vm399 = vcmask 916480
        %v400 = vsel %vm399, %v394, %v396
        %v401 = vsel %vm399, %v396, %v398
        %v404 = vadd.f32 %v384, %v400
        %v405 = vadd.f32 %v385, %v401
        %v406 = vstv %s307
        %v407 = vmul.f32 %v406, %v249
        %v408 = vmul.f32 %v406, %v245
        %v409 = vmul.f32 %v406, %v250
        %413 = vrot.lane.b32.xlu0 %v407, 112
        %v414 = vpop.permute.xlu0 %413
        %415 = vrot.lane.b32.xlu0 %v408, 112
        %v416 = vpop.permute.xlu0 %415
        %417 = vrot.lane.b32.xlu0 %v409, 112
        %v418 = vpop.permute.xlu0 %417
        %v419 = vsel %vm399, %v414, %v416
        %v420 = vsel %vm399, %v416, %v418
        %v423 = vadd.f32 %v404, %v419
        %v424 = vadd.f32 %v405, %v420
        %v425 = vstv %s265
        %v426 = vmul.f32 %v425, %v237
        %v427 = vmul.f32 %v425, %v233
        %v428 = vmul.f32 %v425, %v238
        %432 = vrot.lane.b32.xlu0 %v426, 96
        %v433 = vpop.permute.xlu0 %432
        %434 = vrot.lane.b32.xlu0 %v427, 96
        %v435 = vpop.permute.xlu0 %434
        %436 = vrot.lane.b32.xlu0 %v428, 96
        %v437 = vpop.permute.xlu0 %436
        %vm438 = vcmask 785408
        %v439 = vsel %vm438, %v433, %v435
        %v440 = vsel %vm438, %v435, %v437
        %v443 = vadd.f32 %v423, %v439
        %v444 = vadd.f32 %v424, %v440
        %v445 = vstv %s314
        %v446 = vmul.f32 %v445, %v249
        %v447 = vmul.f32 %v445, %v245
        %v448 = vmul.f32 %v445, %v250
        %452 = vrot.lane.b32.xlu0 %v446, 96
        %v453 = vpop.permute.xlu0 %452
        %454 = vrot.lane.b32.xlu0 %v447, 96
        %v455 = vpop.permute.xlu0 %454
        %456 = vrot.lane.b32.xlu0 %v448, 96
        %v457 = vpop.permute.xlu0 %456
        %v458 = vsel %vm438, %v453, %v455
        %v459 = vsel %vm438, %v455, %v457
        %v462 = vadd.f32 %v443, %v458
        %v463 = vadd.f32 %v444, %v459
        %v464 = vstv %s272
        %v465 = vmul.f32 %v464, %v237
        %v466 = vmul.f32 %v464, %v233
        %v467 = vmul.f32 %v464, %v238
        %471 = vrot.lane.b32.xlu0 %v465, 80
        %v472 = vpop.permute.xlu0 %471
        %473 = vrot.lane.b32.xlu0 %v466, 80
        %v474 = vpop.permute.xlu0 %473
        %475 = vrot.lane.b32.xlu0 %v467, 80
        %v476 = vpop.permute.xlu0 %475
        %vm477 = vcmask 654336
        %v478 = vsel %vm477, %v472, %v474
        %v479 = vsel %vm477, %v474, %v476
        %v482 = vadd.f32 %v462, %v478
        %v483 = vadd.f32 %v463, %v479
        %v484 = vstv %s321
        %v485 = vmul.f32 %v484, %v249
        %v486 = vmul.f32 %v484, %v245
        %v487 = vmul.f32 %v484, %v250
        %491 = vrot.lane.b32.xlu0 %v485, 80
        %v492 = vpop.permute.xlu0 %491
        %493 = vrot.lane.b32.xlu0 %v486, 80
        %v494 = vpop.permute.xlu0 %493
        %495 = vrot.lane.b32.xlu0 %v487, 80
        %v496 = vpop.permute.xlu0 %495
        %v497 = vsel %vm477, %v492, %v494
        %v498 = vsel %vm477, %v494, %v496
        %v501 = vadd.f32 %v482, %v497
        %v502 = vadd.f32 %v483, %v498
        %v503 = vstv %s279
        %v504 = vmul.f32 %v503, %v237
        %v505 = vmul.f32 %v503, %v233
        %v506 = vmul.f32 %v503, %v238
        %510 = vrot.lane.b32.xlu0 %v504, 64
        %v511 = vpop.permute.xlu0 %510
        %512 = vrot.lane.b32.xlu0 %v505, 64
        %v513 = vpop.permute.xlu0 %512
        %514 = vrot.lane.b32.xlu0 %v506, 64
        %v515 = vpop.permute.xlu0 %514
        %vm516 = vcmask 523264
        %v517 = vsel %vm516, %v511, %v513
        %v518 = vsel %vm516, %v513, %v515
        %v521 = vadd.f32 %v501, %v517
        %v522 = vadd.f32 %v502, %v518
        %v523 = vstv %s328
        %v524 = vmul.f32 %v523, %v249
        %v525 = vmul.f32 %v523, %v245
        %v526 = vmul.f32 %v523, %v250
        %530 = vrot.lane.b32.xlu0 %v524, 64
        %v531 = vpop.permute.xlu0 %530
        %532 = vrot.lane.b32.xlu0 %v525, 64
        %v533 = vpop.permute.xlu0 %532
        %534 = vrot.lane.b32.xlu0 %v526, 64
        %v535 = vpop.permute.xlu0 %534
        %v536 = vsel %vm516, %v531, %v533
        %v537 = vsel %vm516, %v533, %v535
        %v540 = vadd.f32 %v521, %v536
        %v541 = vadd.f32 %v522, %v537
        %v542 = vstv %s286
        %v543 = vmul.f32 %v542, %v237
        %v544 = vmul.f32 %v542, %v233
        %v545 = vmul.f32 %v542, %v238
        %549 = vrot.lane.b32.xlu0 %v543, 48
        %v550 = vpop.permute.xlu0 %549
        %551 = vrot.lane.b32.xlu0 %v544, 48
        %v552 = vpop.permute.xlu0 %551
        %553 = vrot.lane.b32.xlu0 %v545, 48
        %v554 = vpop.permute.xlu0 %553
        %vm555 = vcmask 392192
        %v556 = vsel %vm555, %v550, %v552
        %v557 = vsel %vm555, %v552, %v554
        %v560 = vadd.f32 %v540, %v556
        %v561 = vadd.f32 %v541, %v557
        %v562 = vstv %s335
        %v563 = vmul.f32 %v562, %v249
        %v564 = vmul.f32 %v562, %v245
        %v565 = vmul.f32 %v562, %v250
        %569 = vrot.lane.b32.xlu0 %v563, 48
        %v570 = vpop.permute.xlu0 %569
        %571 = vrot.lane.b32.xlu0 %v564, 48
        %v572 = vpop.permute.xlu0 %571
        %573 = vrot.lane.b32.xlu0 %v565, 48
        %v574 = vpop.permute.xlu0 %573
        %v575 = vsel %vm555, %v570, %v572
        %v576 = vsel %vm555, %v572, %v574
        %v579 = vadd.f32 %v560, %v575
        %v580 = vadd.f32 %v561, %v576
        %v581 = vstv %s293
        %v582 = vmul.f32 %v581, %v237
        %v583 = vmul.f32 %v581, %v233
        %v584 = vmul.f32 %v581, %v238
        %588 = vrot.lane.b32.xlu0 %v582, 32
        %v589 = vpop.permute.xlu0 %588
        %590 = vrot.lane.b32.xlu0 %v583, 32
        %v591 = vpop.permute.xlu0 %590
        %592 = vrot.lane.b32.xlu0 %v584, 32
        %v593 = vpop.permute.xlu0 %592
        %vm594 = vcmask 261120
        %v595 = vsel %vm594, %v589, %v591
        %v596 = vsel %vm594, %v591, %v593
        %v599 = vadd.f32 %v579, %v595
        %v600 = vadd.f32 %v580, %v596
        %v601 = vstv %s342
        %v602 = vmul.f32 %v601, %v249
        %v603 = vmul.f32 %v601, %v245
        %v604 = vmul.f32 %v601, %v250
        %608 = vrot.lane.b32.xlu0 %v602, 32
        %v609 = vpop.permute.xlu0 %608
        %610 = vrot.lane.b32.xlu0 %v603, 32
        %v611 = vpop.permute.xlu0 %610
        %612 = vrot.lane.b32.xlu0 %v604, 32
        %v613 = vpop.permute.xlu0 %612
        %v614 = vsel %vm594, %v609, %v611
        %v615 = vsel %vm594, %v611, %v613
        %v618 = vadd.f32 %v599, %v614
        %v619 = vadd.f32 %v600, %v615
        %v620 = vadd.s32 %v374, 4294967293
        %v621 = vadd.s32 %v375, 4294967293
        %vm622 = vcmp.ge.s32.totalorder %v620, 0
        %vm623 = vcmp.ge.s32.totalorder %v621, 0
        %vm624 = vcmp.lt.s32.totalorder %v620, 16
        %vm625 = vcmp.lt.s32.totalorder %v621, 16
        %vm626 = vmand %vm622, %vm624
        %vm627 = vmand %vm623, %vm625
        %v628 = vsel %vm626, %v618, 0.0
        %v629 = vsel %vm627, %v619, 0.0
        %v630 = vadd.f32 %v628, 0.0
        %v631 = vadd.f32 %v629, 0.0
        %v632 = vstv %s252
        %v633 = vmul.f32 %v632, %v237
        %v634 = vmul.f32 %v632, %v233
        %v635 = vmul.f32 %v632, %v238
        %v636 = vadd.f32 %v633, 0.0
        %v637 = vadd.f32 %v634, 0.0
        %v638 = vadd.f32 %v635, 0.0
        %v639 = vstv %s301
        %v640 = vmul.f32 %v639, %v249
        %v641 = vmul.f32 %v639, %v245
        %v642 = vmul.f32 %v639, %v250
        %v643 = vadd.f32 %v636, %v640
        %v644 = vadd.f32 %v637, %v641
        %v645 = vadd.f32 %v638, %v642
        %v646 = vstv %s259
        %v647 = vmul.f32 %v646, %v237
        %v648 = vmul.f32 %v646, %v233
        %v649 = vmul.f32 %v646, %v238
        %653 = vrot.lane.b32.xlu0 %v647, 112
        %v654 = vpop.permute.xlu0 %653
        %655 = vrot.lane.b32.xlu0 %v648, 112
        %v656 = vpop.permute.xlu0 %655
        %657 = vrot.lane.b32.xlu0 %v649, 112
        %v658 = vpop.permute.xlu0 %657
        %v659 = vsel %vm399, %v654, %v656
        %v660 = vsel %vm399, %v656, %v658
        %v664 = vadd.f32 %v643, %v659
        %v665 = vadd.f32 %v644, %v660
        %v666 = vadd.f32 %v645, %v658
        %v667 = vstv %s308
        %v668 = vmul.f32 %v667, %v249
        %v669 = vmul.f32 %v667, %v245
        %v670 = vmul.f32 %v667, %v250
        %674 = vrot.lane.b32.xlu0 %v668, 112
        %v675 = vpop.permute.xlu0 %674
        %676 = vrot.lane.b32.xlu0 %v669, 112
        %v677 = vpop.permute.xlu0 %676
        %678 = vrot.lane.b32.xlu0 %v670, 112
        %v679 = vpop.permute.xlu0 %678
        %v680 = vsel %vm399, %v675, %v677
        %v681 = vsel %vm399, %v677, %v679
        %v685 = vadd.f32 %v664, %v680
        %v686 = vadd.f32 %v665, %v681
        %v687 = vadd.f32 %v666, %v679
        %v688 = vstv %s266
        %v689 = vmul.f32 %v688, %v237
        %v690 = vmul.f32 %v688, %v233
        %v691 = vmul.f32 %v688, %v238
        %695 = vrot.lane.b32.xlu0 %v689, 96
        %v696 = vpop.permute.xlu0 %695
        %697 = vrot.lane.b32.xlu0 %v690, 96
        %v698 = vpop.permute.xlu0 %697
        %699 = vrot.lane.b32.xlu0 %v691, 96
        %v700 = vpop.permute.xlu0 %699
        %v701 = vsel %vm438, %v696, %v698
        %v702 = vsel %vm438, %v698, %v700
        %v706 = vadd.f32 %v685, %v701
        %v707 = vadd.f32 %v686, %v702
        %v708 = vadd.f32 %v687, %v700
        %v709 = vstv %s315
        %v710 = vmul.f32 %v709, %v249
        %v711 = vmul.f32 %v709, %v245
        %v712 = vmul.f32 %v709, %v250
        %716 = vrot.lane.b32.xlu0 %v710, 96
        %v717 = vpop.permute.xlu0 %716
        %718 = vrot.lane.b32.xlu0 %v711, 96
        %v719 = vpop.permute.xlu0 %718
        %720 = vrot.lane.b32.xlu0 %v712, 96
        %v721 = vpop.permute.xlu0 %720
        %v722 = vsel %vm438, %v717, %v719
        %v723 = vsel %vm438, %v719, %v721
        %v727 = vadd.f32 %v706, %v722
        %v728 = vadd.f32 %v707, %v723
        %v729 = vadd.f32 %v708, %v721
        %v730 = vstv %s273
        %v731 = vmul.f32 %v730, %v237
        %v732 = vmul.f32 %v730, %v233
        %v733 = vmul.f32 %v730, %v238
        %737 = vrot.lane.b32.xlu0 %v731, 80
        %v738 = vpop.permute.xlu0 %737
        %739 = vrot.lane.b32.xlu0 %v732, 80
        %v740 = vpop.permute.xlu0 %739
        %741 = vrot.lane.b32.xlu0 %v733, 80
        %v742 = vpop.permute.xlu0 %741
        %v743 = vsel %vm477, %v738, %v740
        %v744 = vsel %vm477, %v740, %v742
        %v748 = vadd.f32 %v727, %v743
        %v749 = vadd.f32 %v728, %v744
        %v750 = vadd.f32 %v729, %v742
        %v751 = vstv %s322
        %v752 = vmul.f32 %v751, %v249
        %v753 = vmul.f32 %v751, %v245
        %v754 = vmul.f32 %v751, %v250
        %758 = vrot.lane.b32.xlu0 %v752, 80
        %v759 = vpop.permute.xlu0 %758
        %760 = vrot.lane.b32.xlu0 %v753, 80
        %v761 = vpop.permute.xlu0 %760
        %762 = vrot.lane.b32.xlu0 %v754, 80
        %v763 = vpop.permute.xlu0 %762
        %v764 = vsel %vm477, %v759, %v761
        %v765 = vsel %vm477, %v761, %v763
        %v769 = vadd.f32 %v748, %v764
        %v770 = vadd.f32 %v749, %v765
        %v771 = vadd.f32 %v750, %v763
        %v772 = vstv %s280
        %v773 = vmul.f32 %v772, %v237
        %v774 = vmul.f32 %v772, %v233
        %v775 = vmul.f32 %v772, %v238
        %779 = vrot.lane.b32.xlu0 %v773, 64
        %v780 = vpop.permute.xlu0 %779
        %781 = vrot.lane.b32.xlu0 %v774, 64
        %v782 = vpop.permute.xlu0 %781
        %783 = vrot.lane.b32.xlu0 %v775, 64
        %v784 = vpop.permute.xlu0 %783
        %v785 = vsel %vm516, %v780, %v782
        %v786 = vsel %vm516, %v782, %v784
        %v790 = vadd.f32 %v769, %v785
        %v791 = vadd.f32 %v770, %v786
        %v792 = vadd.f32 %v771, %v784
        %v793 = vstv %s329
        %v794 = vmul.f32 %v793, %v249
        %v795 = vmul.f32 %v793, %v245
        %v796 = vmul.f32 %v793, %v250
        %800 = vrot.lane.b32.xlu0 %v794, 64
        %v801 = vpop.permute.xlu0 %800
        %802 = vrot.lane.b32.xlu0 %v795, 64
        %v803 = vpop.permute.xlu0 %802
        %804 = vrot.lane.b32.xlu0 %v796, 64
        %v805 = vpop.permute.xlu0 %804
        %v806 = vsel %vm516, %v801, %v803
        %v807 = vsel %vm516, %v803, %v805
        %v811 = vadd.f32 %v790, %v806
        %v812 = vadd.f32 %v791, %v807
        %v813 = vadd.f32 %v792, %v805
        %v814 = vstv %s287
        %v815 = vmul.f32 %v814, %v237
        %v816 = vmul.f32 %v814, %v233
        %v817 = vmul.f32 %v814, %v238
        %821 = vrot.lane.b32.xlu0 %v815, 48
        %v822 = vpop.permute.xlu0 %821
        %823 = vrot.lane.b32.xlu0 %v816, 48
        %v824 = vpop.permute.xlu0 %823
        %825 = vrot.lane.b32.xlu0 %v817, 48
        %v826 = vpop.permute.xlu0 %825
        %v827 = vsel %vm555, %v822, %v824
        %v828 = vsel %vm555, %v824, %v826
        %v832 = vadd.f32 %v811, %v827
        %v833 = vadd.f32 %v812, %v828
        %v834 = vadd.f32 %v813, %v826
        %v835 = vstv %s336
        %v836 = vmul.f32 %v835, %v249
        %v837 = vmul.f32 %v835, %v245
        %v838 = vmul.f32 %v835, %v250
        %842 = vrot.lane.b32.xlu0 %v836, 48
        %v843 = vpop.permute.xlu0 %842
        %844 = vrot.lane.b32.xlu0 %v837, 48
        %v845 = vpop.permute.xlu0 %844
        %846 = vrot.lane.b32.xlu0 %v838, 48
        %v847 = vpop.permute.xlu0 %846
        %v848 = vsel %vm555, %v843, %v845
        %v849 = vsel %vm555, %v845, %v847
        %v853 = vadd.f32 %v832, %v848
        %v854 = vadd.f32 %v833, %v849
        %v855 = vadd.f32 %v834, %v847
        %v856 = vstv %s294
        %v857 = vmul.f32 %v856, %v237
        %v858 = vmul.f32 %v856, %v233
        %v859 = vmul.f32 %v856, %v238
        %863 = vrot.lane.b32.xlu0 %v857, 32
        %v864 = vpop.permute.xlu0 %863
        %865 = vrot.lane.b32.xlu0 %v858, 32
        %v866 = vpop.permute.xlu0 %865
        %867 = vrot.lane.b32.xlu0 %v859, 32
        %v868 = vpop.permute.xlu0 %867
        %v869 = vsel %vm594, %v864, %v866
        %v870 = vsel %vm594, %v866, %v868
        %v874 = vadd.f32 %v853, %v869
        %v875 = vadd.f32 %v854, %v870
        %v876 = vadd.f32 %v855, %v868
        %v877 = vstv %s343
        %v878 = vmul.f32 %v877, %v249
        %v879 = vmul.f32 %v877, %v245
        %v880 = vmul.f32 %v877, %v250
        %884 = vrot.lane.b32.xlu0 %v878, 32
        %v885 = vpop.permute.xlu0 %884
        %886 = vrot.lane.b32.xlu0 %v879, 32
        %v887 = vpop.permute.xlu0 %886
        %888 = vrot.lane.b32.xlu0 %v880, 32
        %v889 = vpop.permute.xlu0 %888
        %v890 = vsel %vm594, %v885, %v887
        %v891 = vsel %vm594, %v887, %v889
        %v895 = vadd.f32 %v874, %v890
        %v896 = vadd.f32 %v875, %v891
        %v897 = vadd.f32 %v876, %v889
        %v898 = vadd.s32 %v374, 4294967294
        %v899 = vadd.s32 %v375, 4294967294
        %vm900 = vcmp.ge.s32.totalorder %v898, 0
        %vm901 = vcmp.ge.s32.totalorder %v899, 0
        %vm902 = vcmp.lt.s32.totalorder %v898, 16
        %vm903 = vcmp.lt.s32.totalorder %v899, 16
        %vm904 = vmand %vm900, %vm902
        %vm905 = vmand %vm901, %vm903
        %909 = vrot.lane.b32.xlu0 %v895, 127
        %v910 = vpop.permute.xlu0 %909
        %911 = vrot.lane.b32.xlu0 %v896, 127
        %v912 = vpop.permute.xlu0 %911
        %913 = vrot.lane.b32.xlu0 %v897, 127
        %v914 = vpop.permute.xlu0 %913
        %vm915 = vcmask 1039360
        %v916 = vsel %vm915, %v910, %v912
        %v917 = vsel %vm915, %v912, %v914
        %v920 = vsel %vm904, %v916, 0.0
        %v921 = vsel %vm905, %v917, 0.0
        %v922 = vadd.f32 %v630, %v920
        %v923 = vadd.f32 %v631, %v921
        %v924 = vstv %s253
        %v925 = vmul.f32 %v924, %v237
        %v926 = vmul.f32 %v924, %v233
        %v927 = vmul.f32 %v924, %v238
        %v928 = vadd.f32 %v925, 0.0
        %v929 = vadd.f32 %v926, 0.0
        %v930 = vadd.f32 %v927, 0.0
        %v931 = vstv %s302
        %v932 = vmul.f32 %v931, %v249
        %v933 = vmul.f32 %v931, %v245
        %v934 = vmul.f32 %v931, %v250
        %v935 = vadd.f32 %v928, %v932
        %v936 = vadd.f32 %v929, %v933
        %v937 = vadd.f32 %v930, %v934
        %v938 = vstv %s260
        %v939 = vmul.f32 %v938, %v237
        %v940 = vmul.f32 %v938, %v233
        %v941 = vmul.f32 %v938, %v238
        %945 = vrot.lane.b32.xlu0 %v939, 112
        %v946 = vpop.permute.xlu0 %945
        %947 = vrot.lane.b32.xlu0 %v940, 112
        %v948 = vpop.permute.xlu0 %947
        %949 = vrot.lane.b32.xlu0 %v941, 112
        %v950 = vpop.permute.xlu0 %949
        %v951 = vsel %vm399, %v946, %v948
        %v952 = vsel %vm399, %v948, %v950
        %v956 = vadd.f32 %v935, %v951
        %v957 = vadd.f32 %v936, %v952
        %v958 = vadd.f32 %v937, %v950
        %v959 = vstv %s309
        %v960 = vmul.f32 %v959, %v249
        %v961 = vmul.f32 %v959, %v245
        %v962 = vmul.f32 %v959, %v250
        %966 = vrot.lane.b32.xlu0 %v960, 112
        %v967 = vpop.permute.xlu0 %966
        %968 = vrot.lane.b32.xlu0 %v961, 112
        %v969 = vpop.permute.xlu0 %968
        %970 = vrot.lane.b32.xlu0 %v962, 112
        %v971 = vpop.permute.xlu0 %970
        %v972 = vsel %vm399, %v967, %v969
        %v973 = vsel %vm399, %v969, %v971
        %v977 = vadd.f32 %v956, %v972
        %v978 = vadd.f32 %v957, %v973
        %v979 = vadd.f32 %v958, %v971
        %v980 = vstv %s267
        %v981 = vmul.f32 %v980, %v237
        %v982 = vmul.f32 %v980, %v233
        %v983 = vmul.f32 %v980, %v238
        %987 = vrot.lane.b32.xlu0 %v981, 96
        %v988 = vpop.permute.xlu0 %987
        %989 = vrot.lane.b32.xlu0 %v982, 96
        %v990 = vpop.permute.xlu0 %989
        %991 = vrot.lane.b32.xlu0 %v983, 96
        %v992 = vpop.permute.xlu0 %991
        %v993 = vsel %vm438, %v988, %v990
        %v994 = vsel %vm438, %v990, %v992
        %v998 = vadd.f32 %v977, %v993
        %v999 = vadd.f32 %v978, %v994
        %v1000 = vadd.f32 %v979, %v992
        %v1001 = vstv %s316
        %v1002 = vmul.f32 %v1001, %v249
        %v1003 = vmul.f32 %v1001, %v245
        %v1004 = vmul.f32 %v1001, %v250
        %1008 = vrot.lane.b32.xlu0 %v1002, 96
        %v1009 = vpop.permute.xlu0 %1008
        %1010 = vrot.lane.b32.xlu0 %v1003, 96
        %v1011 = vpop.permute.xlu0 %1010
        %1012 = vrot.lane.b32.xlu0 %v1004, 96
        %v1013 = vpop.permute.xlu0 %1012
        %v1014 = vsel %vm438, %v1009, %v1011
        %v1015 = vsel %vm438, %v1011, %v1013
        %v1019 = vadd.f32 %v998, %v1014
        %v1020 = vadd.f32 %v999, %v1015
        %v1021 = vadd.f32 %v1000, %v1013
        %v1022 = vstv %s274
        %v1023 = vmul.f32 %v1022, %v237
        %v1024 = vmul.f32 %v1022, %v233
        %v1025 = vmul.f32 %v1022, %v238
        %1029 = vrot.lane.b32.xlu0 %v1023, 80
        %v1030 = vpop.permute.xlu0 %1029
        %1031 = vrot.lane.b32.xlu0 %v1024, 80
        %v1032 = vpop.permute.xlu0 %1031
        %1033 = vrot.lane.b32.xlu0 %v1025, 80
        %v1034 = vpop.permute.xlu0 %1033
        %v1035 = vsel %vm477, %v1030, %v1032
        %v1036 = vsel %vm477, %v1032, %v1034
        %v1040 = vadd.f32 %v1019, %v1035
        %v1041 = vadd.f32 %v1020, %v1036
        %v1042 = vadd.f32 %v1021, %v1034
        %v1043 = vstv %s323
        %v1044 = vmul.f32 %v1043, %v249
        %v1045 = vmul.f32 %v1043, %v245
        %v1046 = vmul.f32 %v1043, %v250
        %1050 = vrot.lane.b32.xlu0 %v1044, 80
        %v1051 = vpop.permute.xlu0 %1050
        %1052 = vrot.lane.b32.xlu0 %v1045, 80
        %v1053 = vpop.permute.xlu0 %1052
        %1054 = vrot.lane.b32.xlu0 %v1046, 80
        %v1055 = vpop.permute.xlu0 %1054
        %v1056 = vsel %vm477, %v1051, %v1053
        %v1057 = vsel %vm477, %v1053, %v1055
        %v1061 = vadd.f32 %v1040, %v1056
        %v1062 = vadd.f32 %v1041, %v1057
        %v1063 = vadd.f32 %v1042, %v1055
        %v1064 = vstv %s281
        %v1065 = vmul.f32 %v1064, %v237
        %v1066 = vmul.f32 %v1064, %v233
        %v1067 = vmul.f32 %v1064, %v238
        %1071 = vrot.lane.b32.xlu0 %v1065, 64
        %v1072 = vpop.permute.xlu0 %1071
        %1073 = vrot.lane.b32.xlu0 %v1066, 64
        %v1074 = vpop.permute.xlu0 %1073
        %1075 = vrot.lane.b32.xlu0 %v1067, 64
        %v1076 = vpop.permute.xlu0 %1075
        %v1077 = vsel %vm516, %v1072, %v1074
        %v1078 = vsel %vm516, %v1074, %v1076
        %v1082 = vadd.f32 %v1061, %v1077
        %v1083 = vadd.f32 %v1062, %v1078
        %v1084 = vadd.f32 %v1063, %v1076
        %v1085 = vstv %s330
        %v1086 = vmul.f32 %v1085, %v249
        %v1087 = vmul.f32 %v1085, %v245
        %v1088 = vmul.f32 %v1085, %v250
        %1092 = vrot.lane.b32.xlu0 %v1086, 64
        %v1093 = vpop.permute.xlu0 %1092
        %1094 = vrot.lane.b32.xlu0 %v1087, 64
        %v1095 = vpop.permute.xlu0 %1094
        %1096 = vrot.lane.b32.xlu0 %v1088, 64
        %v1097 = vpop.permute.xlu0 %1096
        %v1098 = vsel %vm516, %v1093, %v1095
        %v1099 = vsel %vm516, %v1095, %v1097
        %v1103 = vadd.f32 %v1082, %v1098
        %v1104 = vadd.f32 %v1083, %v1099
        %v1105 = vadd.f32 %v1084, %v1097
        %v1106 = vstv %s288
        %v1107 = vmul.f32 %v1106, %v237
        %v1108 = vmul.f32 %v1106, %v233
        %v1109 = vmul.f32 %v1106, %v238
        %1113 = vrot.lane.b32.xlu0 %v1107, 48
        %v1114 = vpop.permute.xlu0 %1113
        %1115 = vrot.lane.b32.xlu0 %v1108, 48
        %v1116 = vpop.permute.xlu0 %1115
        %1117 = vrot.lane.b32.xlu0 %v1109, 48
        %v1118 = vpop.permute.xlu0 %1117
        %v1119 = vsel %vm555, %v1114, %v1116
        %v1120 = vsel %vm555, %v1116, %v1118
        %v1124 = vadd.f32 %v1103, %v1119
        %v1125 = vadd.f32 %v1104, %v1120
        %v1126 = vadd.f32 %v1105, %v1118
        %v1127 = vstv %s337
        %v1128 = vmul.f32 %v1127, %v249
        %v1129 = vmul.f32 %v1127, %v245
        %v1130 = vmul.f32 %v1127, %v250
        %1134 = vrot.lane.b32.xlu0 %v1128, 48
        %v1135 = vpop.permute.xlu0 %1134
        %1136 = vrot.lane.b32.xlu0 %v1129, 48
        %v1137 = vpop.permute.xlu0 %1136
        %1138 = vrot.lane.b32.xlu0 %v1130, 48
        %v1139 = vpop.permute.xlu0 %1138
        %v1140 = vsel %vm555, %v1135, %v1137
        %v1141 = vsel %vm555, %v1137, %v1139
        %v1145 = vadd.f32 %v1124, %v1140
        %v1146 = vadd.f32 %v1125, %v1141
        %v1147 = vadd.f32 %v1126, %v1139
        %v1148 = vstv %s295
        %v1149 = vmul.f32 %v1148, %v237
        %v1150 = vmul.f32 %v1148, %v233
        %v1151 = vmul.f32 %v1148, %v238
        %1155 = vrot.lane.b32.xlu0 %v1149, 32
        %v1156 = vpop.permute.xlu0 %1155
        %1157 = vrot.lane.b32.xlu0 %v1150, 32
        %v1158 = vpop.permute.xlu0 %1157
        %1159 = vrot.lane.b32.xlu0 %v1151, 32
        %v1160 = vpop.permute.xlu0 %1159
        %v1161 = vsel %vm594, %v1156, %v1158
        %v1162 = vsel %vm594, %v1158, %v1160
        %v1166 = vadd.f32 %v1145, %v1161
        %v1167 = vadd.f32 %v1146, %v1162
        %v1168 = vadd.f32 %v1147, %v1160
        %v1169 = vstv %s344
        %v1170 = vmul.f32 %v1169, %v249
        %v1171 = vmul.f32 %v1169, %v245
        %v1172 = vmul.f32 %v1169, %v250
        %1176 = vrot.lane.b32.xlu0 %v1170, 32
        %v1177 = vpop.permute.xlu0 %1176
        %1178 = vrot.lane.b32.xlu0 %v1171, 32
        %v1179 = vpop.permute.xlu0 %1178
        %1180 = vrot.lane.b32.xlu0 %v1172, 32
        %v1181 = vpop.permute.xlu0 %1180
        %v1182 = vsel %vm594, %v1177, %v1179
        %v1183 = vsel %vm594, %v1179, %v1181
        %v1187 = vadd.f32 %v1166, %v1182
        %v1188 = vadd.f32 %v1167, %v1183
        %v1189 = vadd.f32 %v1168, %v1181
        %v1190 = vadd.s32 %v374, 4294967295
        %v1191 = vadd.s32 %v375, 4294967295
        %vm1192 = vcmp.ge.s32.totalorder %v1190, 0
        %vm1193 = vcmp.ge.s32.totalorder %v1191, 0
        %vm1194 = vcmp.lt.s32.totalorder %v1190, 16
        %vm1195 = vcmp.lt.s32.totalorder %v1191, 16
        %vm1196 = vmand %vm1192, %vm1194
        %vm1197 = vmand %vm1193, %vm1195
        %1201 = vrot.lane.b32.xlu0 %v1187, 126
        %v1202 = vpop.permute.xlu0 %1201
        %1203 = vrot.lane.b32.xlu0 %v1188, 126
        %v1204 = vpop.permute.xlu0 %1203
        %1205 = vrot.lane.b32.xlu0 %v1189, 126
        %v1206 = vpop.permute.xlu0 %1205
        %vm1207 = vcmask 1031168
        %v1208 = vsel %vm1207, %v1202, %v1204
        %v1209 = vsel %vm1207, %v1204, %v1206
        %v1212 = vsel %vm1196, %v1208, 0.0
        %v1213 = vsel %vm1197, %v1209, 0.0
        %v1214 = vadd.f32 %v922, %v1212
        %v1215 = vadd.f32 %v923, %v1213
        %v1216 = vstv %s254
        %v1217 = vmul.f32 %v1216, %v237
        %v1218 = vmul.f32 %v1216, %v233
        %v1219 = vmul.f32 %v1216, %v238
        %v1220 = vadd.f32 %v1217, 0.0
        %v1221 = vadd.f32 %v1218, 0.0
        %v1222 = vadd.f32 %v1219, 0.0
        %v1223 = vstv %s303
        %v1224 = vmul.f32 %v1223, %v249
        %v1225 = vmul.f32 %v1223, %v245
        %v1226 = vmul.f32 %v1223, %v250
        %v1227 = vadd.f32 %v1220, %v1224
        %v1228 = vadd.f32 %v1221, %v1225
        %v1229 = vadd.f32 %v1222, %v1226
        %v1230 = vstv %s261
        %v1231 = vmul.f32 %v1230, %v237
        %v1232 = vmul.f32 %v1230, %v233
        %v1233 = vmul.f32 %v1230, %v238
        %1237 = vrot.lane.b32.xlu0 %v1231, 112
        %v1238 = vpop.permute.xlu0 %1237
        %1239 = vrot.lane.b32.xlu0 %v1232, 112
        %v1240 = vpop.permute.xlu0 %1239
        %1241 = vrot.lane.b32.xlu0 %v1233, 112
        %v1242 = vpop.permute.xlu0 %1241
        %v1243 = vsel %vm399, %v1238, %v1240
        %v1244 = vsel %vm399, %v1240, %v1242
        %v1248 = vadd.f32 %v1227, %v1243
        %v1249 = vadd.f32 %v1228, %v1244
        %v1250 = vadd.f32 %v1229, %v1242
        %v1251 = vstv %s310
        %v1252 = vmul.f32 %v1251, %v249
        %v1253 = vmul.f32 %v1251, %v245
        %v1254 = vmul.f32 %v1251, %v250
        %1258 = vrot.lane.b32.xlu0 %v1252, 112
        %v1259 = vpop.permute.xlu0 %1258
        %1260 = vrot.lane.b32.xlu0 %v1253, 112
        %v1261 = vpop.permute.xlu0 %1260
        %1262 = vrot.lane.b32.xlu0 %v1254, 112
        %v1263 = vpop.permute.xlu0 %1262
        %v1264 = vsel %vm399, %v1259, %v1261
        %v1265 = vsel %vm399, %v1261, %v1263
        %v1269 = vadd.f32 %v1248, %v1264
        %v1270 = vadd.f32 %v1249, %v1265
        %v1271 = vadd.f32 %v1250, %v1263
        %v1272 = vstv %s268
        %v1273 = vmul.f32 %v1272, %v237
        %v1274 = vmul.f32 %v1272, %v233
        %v1275 = vmul.f32 %v1272, %v238
        %1279 = vrot.lane.b32.xlu0 %v1273, 96
        %v1280 = vpop.permute.xlu0 %1279
        %1281 = vrot.lane.b32.xlu0 %v1274, 96
        %v1282 = vpop.permute.xlu0 %1281
        %1283 = vrot.lane.b32.xlu0 %v1275, 96
        %v1284 = vpop.permute.xlu0 %1283
        %v1285 = vsel %vm438, %v1280, %v1282
        %v1286 = vsel %vm438, %v1282, %v1284
        %v1290 = vadd.f32 %v1269, %v1285
        %v1291 = vadd.f32 %v1270, %v1286
        %v1292 = vadd.f32 %v1271, %v1284
        %v1293 = vstv %s317
        %v1294 = vmul.f32 %v1293, %v249
        %v1295 = vmul.f32 %v1293, %v245
        %v1296 = vmul.f32 %v1293, %v250
        %1300 = vrot.lane.b32.xlu0 %v1294, 96
        %v1301 = vpop.permute.xlu0 %1300
        %1302 = vrot.lane.b32.xlu0 %v1295, 96
        %v1303 = vpop.permute.xlu0 %1302
        %1304 = vrot.lane.b32.xlu0 %v1296, 96
        %v1305 = vpop.permute.xlu0 %1304
        %v1306 = vsel %vm438, %v1301, %v1303
        %v1307 = vsel %vm438, %v1303, %v1305
        %v1311 = vadd.f32 %v1290, %v1306
        %v1312 = vadd.f32 %v1291, %v1307
        %v1313 = vadd.f32 %v1292, %v1305
        %v1314 = vstv %s275
        %v1315 = vmul.f32 %v1314, %v237
        %v1316 = vmul.f32 %v1314, %v233
        %v1317 = vmul.f32 %v1314, %v238
        %1321 = vrot.lane.b32.xlu0 %v1315, 80
        %v1322 = vpop.permute.xlu0 %1321
        %1323 = vrot.lane.b32.xlu0 %v1316, 80
        %v1324 = vpop.permute.xlu0 %1323
        %1325 = vrot.lane.b32.xlu0 %v1317, 80
        %v1326 = vpop.permute.xlu0 %1325
        %v1327 = vsel %vm477, %v1322, %v1324
        %v1328 = vsel %vm477, %v1324, %v1326
        %v1332 = vadd.f32 %v1311, %v1327
        %v1333 = vadd.f32 %v1312, %v1328
        %v1334 = vadd.f32 %v1313, %v1326
        %v1335 = vstv %s324
        %v1336 = vmul.f32 %v1335, %v249
        %v1337 = vmul.f32 %v1335, %v245
        %v1338 = vmul.f32 %v1335, %v250
        %1342 = vrot.lane.b32.xlu0 %v1336, 80
        %v1343 = vpop.permute.xlu0 %1342
        %1344 = vrot.lane.b32.xlu0 %v1337, 80
        %v1345 = vpop.permute.xlu0 %1344
        %1346 = vrot.lane.b32.xlu0 %v1338, 80
        %v1347 = vpop.permute.xlu0 %1346
        %v1348 = vsel %vm477, %v1343, %v1345
        %v1349 = vsel %vm477, %v1345, %v1347
        %v1353 = vadd.f32 %v1332, %v1348
        %v1354 = vadd.f32 %v1333, %v1349
        %v1355 = vadd.f32 %v1334, %v1347
        %v1356 = vstv %s282
        %v1357 = vmul.f32 %v1356, %v237
        %v1358 = vmul.f32 %v1356, %v233
        %v1359 = vmul.f32 %v1356, %v238
        %1363 = vrot.lane.b32.xlu0 %v1357, 64
        %v1364 = vpop.permute.xlu0 %1363
        %1365 = vrot.lane.b32.xlu0 %v1358, 64
        %v1366 = vpop.permute.xlu0 %1365
        %1367 = vrot.lane.b32.xlu0 %v1359, 64
        %v1368 = vpop.permute.xlu0 %1367
        %v1369 = vsel %vm516, %v1364, %v1366
        %v1370 = vsel %vm516, %v1366, %v1368
        %v1374 = vadd.f32 %v1353, %v1369
        %v1375 = vadd.f32 %v1354, %v1370
        %v1376 = vadd.f32 %v1355, %v1368
        %v1377 = vstv %s331
        %v1378 = vmul.f32 %v1377, %v249
        %v1379 = vmul.f32 %v1377, %v245
        %v1380 = vmul.f32 %v1377, %v250
        %1384 = vrot.lane.b32.xlu0 %v1378, 64
        %v1385 = vpop.permute.xlu0 %1384
        %1386 = vrot.lane.b32.xlu0 %v1379, 64
        %v1387 = vpop.permute.xlu0 %1386
        %1388 = vrot.lane.b32.xlu0 %v1380, 64
        %v1389 = vpop.permute.xlu0 %1388
        %v1390 = vsel %vm516, %v1385, %v1387
        %v1391 = vsel %vm516, %v1387, %v1389
        %v1395 = vadd.f32 %v1374, %v1390
        %v1396 = vadd.f32 %v1375, %v1391
        %v1397 = vadd.f32 %v1376, %v1389
        %v1398 = vstv %s289
        %v1399 = vmul.f32 %v1398, %v237
        %v1400 = vmul.f32 %v1398, %v233
        %v1401 = vmul.f32 %v1398, %v238
        %1405 = vrot.lane.b32.xlu0 %v1399, 48
        %v1406 = vpop.permute.xlu0 %1405
        %1407 = vrot.lane.b32.xlu0 %v1400, 48
        %v1408 = vpop.permute.xlu0 %1407
        %1409 = vrot.lane.b32.xlu0 %v1401, 48
        %v1410 = vpop.permute.xlu0 %1409
        %v1411 = vsel %vm555, %v1406, %v1408
        %v1412 = vsel %vm555, %v1408, %v1410
        %v1416 = vadd.f32 %v1395, %v1411
        %v1417 = vadd.f32 %v1396, %v1412
        %v1418 = vadd.f32 %v1397, %v1410
        %v1419 = vstv %s338
        %v1420 = vmul.f32 %v1419, %v249
        %v1421 = vmul.f32 %v1419, %v245
        %v1422 = vmul.f32 %v1419, %v250
        %1426 = vrot.lane.b32.xlu0 %v1420, 48
        %v1427 = vpop.permute.xlu0 %1426
        %1428 = vrot.lane.b32.xlu0 %v1421, 48
        %v1429 = vpop.permute.xlu0 %1428
        %1430 = vrot.lane.b32.xlu0 %v1422, 48
        %v1431 = vpop.permute.xlu0 %1430
        %v1432 = vsel %vm555, %v1427, %v1429
        %v1433 = vsel %vm555, %v1429, %v1431
        %v1437 = vadd.f32 %v1416, %v1432
        %v1438 = vadd.f32 %v1417, %v1433
        %v1439 = vadd.f32 %v1418, %v1431
        %v1440 = vstv %s296
        %v1441 = vmul.f32 %v1440, %v237
        %v1442 = vmul.f32 %v1440, %v233
        %v1443 = vmul.f32 %v1440, %v238
        %1447 = vrot.lane.b32.xlu0 %v1441, 32
        %v1448 = vpop.permute.xlu0 %1447
        %1449 = vrot.lane.b32.xlu0 %v1442, 32
        %v1450 = vpop.permute.xlu0 %1449
        %1451 = vrot.lane.b32.xlu0 %v1443, 32
        %v1452 = vpop.permute.xlu0 %1451
        %v1453 = vsel %vm594, %v1448, %v1450
        %v1454 = vsel %vm594, %v1450, %v1452
        %v1458 = vadd.f32 %v1437, %v1453
        %v1459 = vadd.f32 %v1438, %v1454
        %v1460 = vadd.f32 %v1439, %v1452
        %v1461 = vstv %s345
        %v1462 = vmul.f32 %v1461, %v249
        %v1463 = vmul.f32 %v1461, %v245
        %v1464 = vmul.f32 %v1461, %v250
        %1468 = vrot.lane.b32.xlu0 %v1462, 32
        %v1469 = vpop.permute.xlu0 %1468
        %1470 = vrot.lane.b32.xlu0 %v1463, 32
        %v1471 = vpop.permute.xlu0 %1470
        %1472 = vrot.lane.b32.xlu0 %v1464, 32
        %v1473 = vpop.permute.xlu0 %1472
        %v1474 = vsel %vm594, %v1469, %v1471
        %v1475 = vsel %vm594, %v1471, %v1473
        %v1479 = vadd.f32 %v1458, %v1474
        %v1480 = vadd.f32 %v1459, %v1475
        %v1481 = vadd.f32 %v1460, %v1473
        %vm1482 = vcmp.ge.s32.totalorder %v374, 0
        %vm1483 = vcmp.ge.s32.totalorder %v375, 0
        %vm1484 = vcmp.lt.s32.totalorder %v374, 16
        %vm1485 = vcmp.lt.s32.totalorder %v375, 16
        %vm1486 = vmand %vm1482, %vm1484
        %vm1487 = vmand %vm1483, %vm1485
        %1491 = vrot.lane.b32.xlu0 %v1479, 125
        %v1492 = vpop.permute.xlu0 %1491
        %1493 = vrot.lane.b32.xlu0 %v1480, 125
        %v1494 = vpop.permute.xlu0 %1493
        %1495 = vrot.lane.b32.xlu0 %v1481, 125
        %v1496 = vpop.permute.xlu0 %1495
        %vm1497 = vcmask 1022976
        %v1498 = vsel %vm1497, %v1492, %v1494
        %v1499 = vsel %vm1497, %v1494, %v1496
        %v1502 = vsel %vm1486, %v1498, 0.0
        %v1503 = vsel %vm1487, %v1499, 0.0
        %v1504 = vadd.f32 %v1214, %v1502
        %v1505 = vadd.f32 %v1215, %v1503
        %v1506 = vstv %s255
        %v1507 = vmul.f32 %v1506, %v237
        %v1508 = vmul.f32 %v1506, %v233
        %v1509 = vmul.f32 %v1506, %v238
        %v1510 = vadd.f32 %v1507, 0.0
        %v1511 = vadd.f32 %v1508, 0.0
        %v1512 = vadd.f32 %v1509, 0.0
        %v1513 = vstv %s304
        %v1514 = vmul.f32 %v1513, %v249
        %v1515 = vmul.f32 %v1513, %v245
        %v1516 = vmul.f32 %v1513, %v250
        %v1517 = vadd.f32 %v1510, %v1514
        %v1518 = vadd.f32 %v1511, %v1515
        %v1519 = vadd.f32 %v1512, %v1516
        %v1520 = vstv %s262
        %v1521 = vmul.f32 %v1520, %v237
        %v1522 = vmul.f32 %v1520, %v233
        %v1523 = vmul.f32 %v1520, %v238
        %1527 = vrot.lane.b32.xlu0 %v1521, 112
        %v1528 = vpop.permute.xlu0 %1527
        %1529 = vrot.lane.b32.xlu0 %v1522, 112
        %v1530 = vpop.permute.xlu0 %1529
        %1531 = vrot.lane.b32.xlu0 %v1523, 112
        %v1532 = vpop.permute.xlu0 %1531
        %v1533 = vsel %vm399, %v1528, %v1530
        %v1534 = vsel %vm399, %v1530, %v1532
        %v1538 = vadd.f32 %v1517, %v1533
        %v1539 = vadd.f32 %v1518, %v1534
        %v1540 = vadd.f32 %v1519, %v1532
        %v1541 = vstv %s311
        %v1542 = vmul.f32 %v1541, %v249
        %v1543 = vmul.f32 %v1541, %v245
        %v1544 = vmul.f32 %v1541, %v250
        %1548 = vrot.lane.b32.xlu0 %v1542, 112
        %v1549 = vpop.permute.xlu0 %1548
        %1550 = vrot.lane.b32.xlu0 %v1543, 112
        %v1551 = vpop.permute.xlu0 %1550
        %1552 = vrot.lane.b32.xlu0 %v1544, 112
        %v1553 = vpop.permute.xlu0 %1552
        %v1554 = vsel %vm399, %v1549, %v1551
        %v1555 = vsel %vm399, %v1551, %v1553
        %v1559 = vadd.f32 %v1538, %v1554
        %v1560 = vadd.f32 %v1539, %v1555
        %v1561 = vadd.f32 %v1540, %v1553
        %v1562 = vstv %s269
        %v1563 = vmul.f32 %v1562, %v237
        %v1564 = vmul.f32 %v1562, %v233
        %v1565 = vmul.f32 %v1562, %v238
        %1569 = vrot.lane.b32.xlu0 %v1563, 96
        %v1570 = vpop.permute.xlu0 %1569
        %1571 = vrot.lane.b32.xlu0 %v1564, 96
        %v1572 = vpop.permute.xlu0 %1571
        %1573 = vrot.lane.b32.xlu0 %v1565, 96
        %v1574 = vpop.permute.xlu0 %1573
        %v1575 = vsel %vm438, %v1570, %v1572
        %v1576 = vsel %vm438, %v1572, %v1574
        %v1580 = vadd.f32 %v1559, %v1575
        %v1581 = vadd.f32 %v1560, %v1576
        %v1582 = vadd.f32 %v1561, %v1574
        %v1583 = vstv %s318
        %v1584 = vmul.f32 %v1583, %v249
        %v1585 = vmul.f32 %v1583, %v245
        %v1586 = vmul.f32 %v1583, %v250
        %1590 = vrot.lane.b32.xlu0 %v1584, 96
        %v1591 = vpop.permute.xlu0 %1590
        %1592 = vrot.lane.b32.xlu0 %v1585, 96
        %v1593 = vpop.permute.xlu0 %1592
        %1594 = vrot.lane.b32.xlu0 %v1586, 96
        %v1595 = vpop.permute.xlu0 %1594
        %v1596 = vsel %vm438, %v1591, %v1593
        %v1597 = vsel %vm438, %v1593, %v1595
        %v1601 = vadd.f32 %v1580, %v1596
        %v1602 = vadd.f32 %v1581, %v1597
        %v1603 = vadd.f32 %v1582, %v1595
        %v1604 = vstv %s276
        %v1605 = vmul.f32 %v1604, %v237
        %v1606 = vmul.f32 %v1604, %v233
        %v1607 = vmul.f32 %v1604, %v238
        %1611 = vrot.lane.b32.xlu0 %v1605, 80
        %v1612 = vpop.permute.xlu0 %1611
        %1613 = vrot.lane.b32.xlu0 %v1606, 80
        %v1614 = vpop.permute.xlu0 %1613
        %1615 = vrot.lane.b32.xlu0 %v1607, 80
        %v1616 = vpop.permute.xlu0 %1615
        %v1617 = vsel %vm477, %v1612, %v1614
        %v1618 = vsel %vm477, %v1614, %v1616
        %v1622 = vadd.f32 %v1601, %v1617
        %v1623 = vadd.f32 %v1602, %v1618
        %v1624 = vadd.f32 %v1603, %v1616
        %v1625 = vstv %s325
        %v1626 = vmul.f32 %v1625, %v249
        %v1627 = vmul.f32 %v1625, %v245
        %v1628 = vmul.f32 %v1625, %v250
        %1632 = vrot.lane.b32.xlu0 %v1626, 80
        %v1633 = vpop.permute.xlu0 %1632
        %1634 = vrot.lane.b32.xlu0 %v1627, 80
        %v1635 = vpop.permute.xlu0 %1634
        %1636 = vrot.lane.b32.xlu0 %v1628, 80
        %v1637 = vpop.permute.xlu0 %1636
        %v1638 = vsel %vm477, %v1633, %v1635
        %v1639 = vsel %vm477, %v1635, %v1637
        %v1643 = vadd.f32 %v1622, %v1638
        %v1644 = vadd.f32 %v1623, %v1639
        %v1645 = vadd.f32 %v1624, %v1637
        %v1646 = vstv %s283
        %v1647 = vmul.f32 %v1646, %v237
        %v1648 = vmul.f32 %v1646, %v233
        %v1649 = vmul.f32 %v1646, %v238
        %1653 = vrot.lane.b32.xlu0 %v1647, 64
        %v1654 = vpop.permute.xlu0 %1653
        %1655 = vrot.lane.b32.xlu0 %v1648, 64
        %v1656 = vpop.permute.xlu0 %1655
        %1657 = vrot.lane.b32.xlu0 %v1649, 64
        %v1658 = vpop.permute.xlu0 %1657
        %v1659 = vsel %vm516, %v1654, %v1656
        %v1660 = vsel %vm516, %v1656, %v1658
        %v1664 = vadd.f32 %v1643, %v1659
        %v1665 = vadd.f32 %v1644, %v1660
        %v1666 = vadd.f32 %v1645, %v1658
        %v1667 = vstv %s332
        %v1668 = vmul.f32 %v1667, %v249
        %v1669 = vmul.f32 %v1667, %v245
        %v1670 = vmul.f32 %v1667, %v250
        %1674 = vrot.lane.b32.xlu0 %v1668, 64
        %v1675 = vpop.permute.xlu0 %1674
        %1676 = vrot.lane.b32.xlu0 %v1669, 64
        %v1677 = vpop.permute.xlu0 %1676
        %1678 = vrot.lane.b32.xlu0 %v1670, 64
        %v1679 = vpop.permute.xlu0 %1678
        %v1680 = vsel %vm516, %v1675, %v1677
        %v1681 = vsel %vm516, %v1677, %v1679
        %v1685 = vadd.f32 %v1664, %v1680
        %v1686 = vadd.f32 %v1665, %v1681
        %v1687 = vadd.f32 %v1666, %v1679
        %v1688 = vstv %s290
        %v1689 = vmul.f32 %v1688, %v237
        %v1690 = vmul.f32 %v1688, %v233
        %v1691 = vmul.f32 %v1688, %v238
        %1695 = vrot.lane.b32.xlu0 %v1689, 48
        %v1696 = vpop.permute.xlu0 %1695
        %1697 = vrot.lane.b32.xlu0 %v1690, 48
        %v1698 = vpop.permute.xlu0 %1697
        %1699 = vrot.lane.b32.xlu0 %v1691, 48
        %v1700 = vpop.permute.xlu0 %1699
        %v1701 = vsel %vm555, %v1696, %v1698
        %v1702 = vsel %vm555, %v1698, %v1700
        %v1706 = vadd.f32 %v1685, %v1701
        %v1707 = vadd.f32 %v1686, %v1702
        %v1708 = vadd.f32 %v1687, %v1700
        %v1709 = vstv %s339
        %v1710 = vmul.f32 %v1709, %v249
        %v1711 = vmul.f32 %v1709, %v245
        %v1712 = vmul.f32 %v1709, %v250
        %1716 = vrot.lane.b32.xlu0 %v1710, 48
        %v1717 = vpop.permute.xlu0 %1716
        %1718 = vrot.lane.b32.xlu0 %v1711, 48
        %v1719 = vpop.permute.xlu0 %1718
        %1720 = vrot.lane.b32.xlu0 %v1712, 48
        %v1721 = vpop.permute.xlu0 %1720
        %v1722 = vsel %vm555, %v1717, %v1719
        %v1723 = vsel %vm555, %v1719, %v1721
        %v1727 = vadd.f32 %v1706, %v1722
        %v1728 = vadd.f32 %v1707, %v1723
        %v1729 = vadd.f32 %v1708, %v1721
        %v1730 = vstv %s297
        %v1731 = vmul.f32 %v1730, %v237
        %v1732 = vmul.f32 %v1730, %v233
        %v1733 = vmul.f32 %v1730, %v238
        %1737 = vrot.lane.b32.xlu0 %v1731, 32
        %v1738 = vpop.permute.xlu0 %1737
        %1739 = vrot.lane.b32.xlu0 %v1732, 32
        %v1740 = vpop.permute.xlu0 %1739
        %1741 = vrot.lane.b32.xlu0 %v1733, 32
        %v1742 = vpop.permute.xlu0 %1741
        %v1743 = vsel %vm594, %v1738, %v1740
        %v1744 = vsel %vm594, %v1740, %v1742
        %v1748 = vadd.f32 %v1727, %v1743
        %v1749 = vadd.f32 %v1728, %v1744
        %v1750 = vadd.f32 %v1729, %v1742
        %v1751 = vstv %s346
        %v1752 = vmul.f32 %v1751, %v249
        %v1753 = vmul.f32 %v1751, %v245
        %v1754 = vmul.f32 %v1751, %v250
        %1758 = vrot.lane.b32.xlu0 %v1752, 32
        %v1759 = vpop.permute.xlu0 %1758
        %1760 = vrot.lane.b32.xlu0 %v1753, 32
        %v1761 = vpop.permute.xlu0 %1760
        %1762 = vrot.lane.b32.xlu0 %v1754, 32
        %v1763 = vpop.permute.xlu0 %1762
        %v1764 = vsel %vm594, %v1759, %v1761
        %v1765 = vsel %vm594, %v1761, %v1763
        %v1769 = vadd.f32 %v1748, %v1764
        %v1770 = vadd.f32 %v1749, %v1765
        %v1771 = vadd.f32 %v1750, %v1763
        %v1772 = vadd.s32 %v374, 1
        %v1773 = vadd.s32 %v375, 1
        %vm1774 = vcmp.ge.s32.totalorder %v1772, 0
        %vm1775 = vcmp.ge.s32.totalorder %v1773, 0
        %vm1776 = vcmp.lt.s32.totalorder %v1772, 16
        %vm1777 = vcmp.lt.s32.totalorder %v1773, 16
        %vm1778 = vmand %vm1774, %vm1776
        %vm1779 = vmand %vm1775, %vm1777
        %1783 = vrot.lane.b32.xlu0 %v1769, 124
        %v1784 = vpop.permute.xlu0 %1783
        %1785 = vrot.lane.b32.xlu0 %v1770, 124
        %v1786 = vpop.permute.xlu0 %1785
        %1787 = vrot.lane.b32.xlu0 %v1771, 124
        %v1788 = vpop.permute.xlu0 %1787
        %vm1789 = vcmask 1014784
        %v1790 = vsel %vm1789, %v1784, %v1786
        %v1791 = vsel %vm1789, %v1786, %v1788
        %v1794 = vsel %vm1778, %v1790, 0.0
        %v1795 = vsel %vm1779, %v1791, 0.0
        %v1796 = vadd.f32 %v1504, %v1794
        %v1797 = vadd.f32 %v1505, %v1795
        %v1798 = vstv %s256
        %v1799 = vmul.f32 %v1798, %v237
        %v1800 = vmul.f32 %v1798, %v233
        %v1801 = vmul.f32 %v1798, %v238
        %v1802 = vadd.f32 %v1799, 0.0
        %v1803 = vadd.f32 %v1800, 0.0
        %v1804 = vadd.f32 %v1801, 0.0
        %v1805 = vstv %s305
        %v1806 = vmul.f32 %v1805, %v249
        %v1807 = vmul.f32 %v1805, %v245
        %v1808 = vmul.f32 %v1805, %v250
        %v1809 = vadd.f32 %v1802, %v1806
        %v1810 = vadd.f32 %v1803, %v1807
        %v1811 = vadd.f32 %v1804, %v1808
        %v1812 = vstv %s263
        %v1813 = vmul.f32 %v1812, %v237
        %v1814 = vmul.f32 %v1812, %v233
        %v1815 = vmul.f32 %v1812, %v238
        %1819 = vrot.lane.b32.xlu0 %v1813, 112
        %v1820 = vpop.permute.xlu0 %1819
        %1821 = vrot.lane.b32.xlu0 %v1814, 112
        %v1822 = vpop.permute.xlu0 %1821
        %1823 = vrot.lane.b32.xlu0 %v1815, 112
        %v1824 = vpop.permute.xlu0 %1823
        %v1825 = vsel %vm399, %v1820, %v1822
        %v1826 = vsel %vm399, %v1822, %v1824
        %v1830 = vadd.f32 %v1809, %v1825
        %v1831 = vadd.f32 %v1810, %v1826
        %v1832 = vadd.f32 %v1811, %v1824
        %v1833 = vstv %s312
        %v1834 = vmul.f32 %v1833, %v249
        %v1835 = vmul.f32 %v1833, %v245
        %v1836 = vmul.f32 %v1833, %v250
        %1840 = vrot.lane.b32.xlu0 %v1834, 112
        %v1841 = vpop.permute.xlu0 %1840
        %1842 = vrot.lane.b32.xlu0 %v1835, 112
        %v1843 = vpop.permute.xlu0 %1842
        %1844 = vrot.lane.b32.xlu0 %v1836, 112
        %v1845 = vpop.permute.xlu0 %1844
        %v1846 = vsel %vm399, %v1841, %v1843
        %v1847 = vsel %vm399, %v1843, %v1845
        %v1851 = vadd.f32 %v1830, %v1846
        %v1852 = vadd.f32 %v1831, %v1847
        %v1853 = vadd.f32 %v1832, %v1845
        %v1854 = vstv %s270
        %v1855 = vmul.f32 %v1854, %v237
        %v1856 = vmul.f32 %v1854, %v233
        %v1857 = vmul.f32 %v1854, %v238
        %1861 = vrot.lane.b32.xlu0 %v1855, 96
        %v1862 = vpop.permute.xlu0 %1861
        %1863 = vrot.lane.b32.xlu0 %v1856, 96
        %v1864 = vpop.permute.xlu0 %1863
        %1865 = vrot.lane.b32.xlu0 %v1857, 96
        %v1866 = vpop.permute.xlu0 %1865
        %v1867 = vsel %vm438, %v1862, %v1864
        %v1868 = vsel %vm438, %v1864, %v1866
        %v1872 = vadd.f32 %v1851, %v1867
        %v1873 = vadd.f32 %v1852, %v1868
        %v1874 = vadd.f32 %v1853, %v1866
        %v1875 = vstv %s319
        %v1876 = vmul.f32 %v1875, %v249
        %v1877 = vmul.f32 %v1875, %v245
        %v1878 = vmul.f32 %v1875, %v250
        %1882 = vrot.lane.b32.xlu0 %v1876, 96
        %v1883 = vpop.permute.xlu0 %1882
        %1884 = vrot.lane.b32.xlu0 %v1877, 96
        %v1885 = vpop.permute.xlu0 %1884
        %1886 = vrot.lane.b32.xlu0 %v1878, 96
        %v1887 = vpop.permute.xlu0 %1886
        %v1888 = vsel %vm438, %v1883, %v1885
        %v1889 = vsel %vm438, %v1885, %v1887
        %v1893 = vadd.f32 %v1872, %v1888
        %v1894 = vadd.f32 %v1873, %v1889
        %v1895 = vadd.f32 %v1874, %v1887
        %v1896 = vstv %s277
        %v1897 = vmul.f32 %v1896, %v237
        %v1898 = vmul.f32 %v1896, %v233
        %v1899 = vmul.f32 %v1896, %v238
        %1903 = vrot.lane.b32.xlu0 %v1897, 80
        %v1904 = vpop.permute.xlu0 %1903
        %1905 = vrot.lane.b32.xlu0 %v1898, 80
        %v1906 = vpop.permute.xlu0 %1905
        %1907 = vrot.lane.b32.xlu0 %v1899, 80
        %v1908 = vpop.permute.xlu0 %1907
        %v1909 = vsel %vm477, %v1904, %v1906
        %v1910 = vsel %vm477, %v1906, %v1908
        %v1914 = vadd.f32 %v1893, %v1909
        %v1915 = vadd.f32 %v1894, %v1910
        %v1916 = vadd.f32 %v1895, %v1908
        %v1917 = vstv %s326
        %v1918 = vmul.f32 %v1917, %v249
        %v1919 = vmul.f32 %v1917, %v245
        %v1920 = vmul.f32 %v1917, %v250
        %1924 = vrot.lane.b32.xlu0 %v1918, 80
        %v1925 = vpop.permute.xlu0 %1924
        %1926 = vrot.lane.b32.xlu0 %v1919, 80
        %v1927 = vpop.permute.xlu0 %1926
        %1928 = vrot.lane.b32.xlu0 %v1920, 80
        %v1929 = vpop.permute.xlu0 %1928
        %v1930 = vsel %vm477, %v1925, %v1927
        %v1931 = vsel %vm477, %v1927, %v1929
        %v1935 = vadd.f32 %v1914, %v1930
        %v1936 = vadd.f32 %v1915, %v1931
        %v1937 = vadd.f32 %v1916, %v1929
        %v1938 = vstv %s284
        %v1939 = vmul.f32 %v1938, %v237
        %v1940 = vmul.f32 %v1938, %v233
        %v1941 = vmul.f32 %v1938, %v238
        %1945 = vrot.lane.b32.xlu0 %v1939, 64
        %v1946 = vpop.permute.xlu0 %1945
        %1947 = vrot.lane.b32.xlu0 %v1940, 64
        %v1948 = vpop.permute.xlu0 %1947
        %1949 = vrot.lane.b32.xlu0 %v1941, 64
        %v1950 = vpop.permute.xlu0 %1949
        %v1951 = vsel %vm516, %v1946, %v1948
        %v1952 = vsel %vm516, %v1948, %v1950
        %v1956 = vadd.f32 %v1935, %v1951
        %v1957 = vadd.f32 %v1936, %v1952
        %v1958 = vadd.f32 %v1937, %v1950
        %v1959 = vstv %s333
        %v1960 = vmul.f32 %v1959, %v249
        %v1961 = vmul.f32 %v1959, %v245
        %v1962 = vmul.f32 %v1959, %v250
        %1966 = vrot.lane.b32.xlu0 %v1960, 64
        %v1967 = vpop.permute.xlu0 %1966
        %1968 = vrot.lane.b32.xlu0 %v1961, 64
        %v1969 = vpop.permute.xlu0 %1968
        %1970 = vrot.lane.b32.xlu0 %v1962, 64
        %v1971 = vpop.permute.xlu0 %1970
        %v1972 = vsel %vm516, %v1967, %v1969
        %v1973 = vsel %vm516, %v1969, %v1971
        %v1977 = vadd.f32 %v1956, %v1972
        %v1978 = vadd.f32 %v1957, %v1973
        %v1979 = vadd.f32 %v1958, %v1971
        %v1980 = vstv %s291
        %v1981 = vmul.f32 %v1980, %v237
        %v1982 = vmul.f32 %v1980, %v233
        %v1983 = vmul.f32 %v1980, %v238
        %1987 = vrot.lane.b32.xlu0 %v1981, 48
        %v1988 = vpop.permute.xlu0 %1987
        %1989 = vrot.lane.b32.xlu0 %v1982, 48
        %v1990 = vpop.permute.xlu0 %1989
        %1991 = vrot.lane.b32.xlu0 %v1983, 48
        %v1992 = vpop.permute.xlu0 %1991
        %v1993 = vsel %vm555, %v1988, %v1990
        %v1994 = vsel %vm555, %v1990, %v1992
        %v1998 = vadd.f32 %v1977, %v1993
        %v1999 = vadd.f32 %v1978, %v1994
        %v2000 = vadd.f32 %v1979, %v1992
        %v2001 = vstv %s340
        %v2002 = vmul.f32 %v2001, %v249
        %v2003 = vmul.f32 %v2001, %v245
        %v2004 = vmul.f32 %v2001, %v250
        %2008 = vrot.lane.b32.xlu0 %v2002, 48
        %v2009 = vpop.permute.xlu0 %2008
        %2010 = vrot.lane.b32.xlu0 %v2003, 48
        %v2011 = vpop.permute.xlu0 %2010
        %2012 = vrot.lane.b32.xlu0 %v2004, 48
        %v2013 = vpop.permute.xlu0 %2012
        %v2014 = vsel %vm555, %v2009, %v2011
        %v2015 = vsel %vm555, %v2011, %v2013
        %v2019 = vadd.f32 %v1998, %v2014
        %v2020 = vadd.f32 %v1999, %v2015
        %v2021 = vadd.f32 %v2000, %v2013
        %v2022 = vstv %s298
        %v2023 = vmul.f32 %v2022, %v237
        %v2024 = vmul.f32 %v2022, %v233
        %v2025 = vmul.f32 %v2022, %v238
        %2029 = vrot.lane.b32.xlu0 %v2023, 32
        %v2030 = vpop.permute.xlu0 %2029
        %2031 = vrot.lane.b32.xlu0 %v2024, 32
        %v2032 = vpop.permute.xlu0 %2031
        %2033 = vrot.lane.b32.xlu0 %v2025, 32
        %v2034 = vpop.permute.xlu0 %2033
        %v2035 = vsel %vm594, %v2030, %v2032
        %v2036 = vsel %vm594, %v2032, %v2034
        %v2040 = vadd.f32 %v2019, %v2035
        %v2041 = vadd.f32 %v2020, %v2036
        %v2042 = vadd.f32 %v2021, %v2034
        %v2043 = vstv %s347
        %v2044 = vmul.f32 %v2043, %v249
        %v2045 = vmul.f32 %v2043, %v245
        %v2046 = vmul.f32 %v2043, %v250
        %2050 = vrot.lane.b32.xlu0 %v2044, 32
        %v2051 = vpop.permute.xlu0 %2050
        %2052 = vrot.lane.b32.xlu0 %v2045, 32
        %v2053 = vpop.permute.xlu0 %2052
        %2054 = vrot.lane.b32.xlu0 %v2046, 32
        %v2055 = vpop.permute.xlu0 %2054
        %v2056 = vsel %vm594, %v2051, %v2053
        %v2057 = vsel %vm594, %v2053, %v2055
        %v2061 = vadd.f32 %v2040, %v2056
        %v2062 = vadd.f32 %v2041, %v2057
        %v2063 = vadd.f32 %v2042, %v2055
        %v2064 = vadd.s32 %v374, 2
        %v2065 = vadd.s32 %v375, 2
        %vm2066 = vcmp.ge.s32.totalorder %v2064, 0
        %vm2067 = vcmp.ge.s32.totalorder %v2065, 0
        %vm2068 = vcmp.lt.s32.totalorder %v2064, 16
        %vm2069 = vcmp.lt.s32.totalorder %v2065, 16
        %vm2070 = vmand %vm2066, %vm2068
        %vm2071 = vmand %vm2067, %vm2069
        %2075 = vrot.lane.b32.xlu0 %v2061, 123
        %v2076 = vpop.permute.xlu0 %2075
        %2077 = vrot.lane.b32.xlu0 %v2062, 123
        %v2078 = vpop.permute.xlu0 %2077
        %2079 = vrot.lane.b32.xlu0 %v2063, 123
        %v2080 = vpop.permute.xlu0 %2079
        %vm2081 = vcmask 1006592
        %v2082 = vsel %vm2081, %v2076, %v2078
        %v2083 = vsel %vm2081, %v2078, %v2080
        %v2086 = vsel %vm2070, %v2082, 0.0
        %v2087 = vsel %vm2071, %v2083, 0.0
        %v2088 = vadd.f32 %v1796, %v2086
        %v2089 = vadd.f32 %v1797, %v2087
        %v2090 = vstv %s257
        %v2091 = vmul.f32 %v2090, %v237
        %v2092 = vmul.f32 %v2090, %v233
        %v2093 = vmul.f32 %v2090, %v238
        %v2094 = vadd.f32 %v2091, 0.0
        %v2095 = vadd.f32 %v2092, 0.0
        %v2096 = vadd.f32 %v2093, 0.0
        %v2097 = vstv %s306
        %v2098 = vmul.f32 %v2097, %v249
        %v2099 = vmul.f32 %v2097, %v245
        %v2100 = vmul.f32 %v2097, %v250
        %v2101 = vadd.f32 %v2094, %v2098
        %v2102 = vadd.f32 %v2095, %v2099
        %v2103 = vadd.f32 %v2096, %v2100
        %v2104 = vstv %s264
        %v2105 = vmul.f32 %v2104, %v237
        %v2106 = vmul.f32 %v2104, %v233
        %v2107 = vmul.f32 %v2104, %v238
        %2111 = vrot.lane.b32.xlu0 %v2105, 112
        %v2112 = vpop.permute.xlu0 %2111
        %2113 = vrot.lane.b32.xlu0 %v2106, 112
        %v2114 = vpop.permute.xlu0 %2113
        %2115 = vrot.lane.b32.xlu0 %v2107, 112
        %v2116 = vpop.permute.xlu0 %2115
        %v2117 = vsel %vm399, %v2112, %v2114
        %v2118 = vsel %vm399, %v2114, %v2116
        %v2122 = vadd.f32 %v2101, %v2117
        %v2123 = vadd.f32 %v2102, %v2118
        %v2124 = vadd.f32 %v2103, %v2116
        %v2125 = vstv %s313
        %v2126 = vmul.f32 %v2125, %v249
        %v2127 = vmul.f32 %v2125, %v245
        %v2128 = vmul.f32 %v2125, %v250
        %2132 = vrot.lane.b32.xlu0 %v2126, 112
        %v2133 = vpop.permute.xlu0 %2132
        %2134 = vrot.lane.b32.xlu0 %v2127, 112
        %v2135 = vpop.permute.xlu0 %2134
        %2136 = vrot.lane.b32.xlu0 %v2128, 112
        %v2137 = vpop.permute.xlu0 %2136
        %v2138 = vsel %vm399, %v2133, %v2135
        %v2139 = vsel %vm399, %v2135, %v2137
        %v2143 = vadd.f32 %v2122, %v2138
        %v2144 = vadd.f32 %v2123, %v2139
        %v2145 = vadd.f32 %v2124, %v2137
        %v2146 = vstv %s271
        %v2147 = vmul.f32 %v2146, %v237
        %v2148 = vmul.f32 %v2146, %v233
        %v2149 = vmul.f32 %v2146, %v238
        %2153 = vrot.lane.b32.xlu0 %v2147, 96
        %v2154 = vpop.permute.xlu0 %2153
        %2155 = vrot.lane.b32.xlu0 %v2148, 96
        %v2156 = vpop.permute.xlu0 %2155
        %2157 = vrot.lane.b32.xlu0 %v2149, 96
        %v2158 = vpop.permute.xlu0 %2157
        %v2159 = vsel %vm438, %v2154, %v2156
        %v2160 = vsel %vm438, %v2156, %v2158
        %v2164 = vadd.f32 %v2143, %v2159
        %v2165 = vadd.f32 %v2144, %v2160
        %v2166 = vadd.f32 %v2145, %v2158
        %v2167 = vstv %s320
        %v2168 = vmul.f32 %v2167, %v249
        %v2169 = vmul.f32 %v2167, %v245
        %v2170 = vmul.f32 %v2167, %v250
        %2174 = vrot.lane.b32.xlu0 %v2168, 96
        %v2175 = vpop.permute.xlu0 %2174
        %2176 = vrot.lane.b32.xlu0 %v2169, 96
        %v2177 = vpop.permute.xlu0 %2176
        %2178 = vrot.lane.b32.xlu0 %v2170, 96
        %v2179 = vpop.permute.xlu0 %2178
        %v2180 = vsel %vm438, %v2175, %v2177
        %v2181 = vsel %vm438, %v2177, %v2179
        %v2185 = vadd.f32 %v2164, %v2180
        %v2186 = vadd.f32 %v2165, %v2181
        %v2187 = vadd.f32 %v2166, %v2179
        %v2188 = vstv %s278
        %v2189 = vmul.f32 %v2188, %v237
        %v2190 = vmul.f32 %v2188, %v233
        %v2191 = vmul.f32 %v2188, %v238
        %2195 = vrot.lane.b32.xlu0 %v2189, 80
        %v2196 = vpop.permute.xlu0 %2195
        %2197 = vrot.lane.b32.xlu0 %v2190, 80
        %v2198 = vpop.permute.xlu0 %2197
        %2199 = vrot.lane.b32.xlu0 %v2191, 80
        %v2200 = vpop.permute.xlu0 %2199
        %v2201 = vsel %vm477, %v2196, %v2198
        %v2202 = vsel %vm477, %v2198, %v2200
        %v2206 = vadd.f32 %v2185, %v2201
        %v2207 = vadd.f32 %v2186, %v2202
        %v2208 = vadd.f32 %v2187, %v2200
        %v2209 = vstv %s327
        %v2210 = vmul.f32 %v2209, %v249
        %v2211 = vmul.f32 %v2209, %v245
        %v2212 = vmul.f32 %v2209, %v250
        %2216 = vrot.lane.b32.xlu0 %v2210, 80
        %v2217 = vpop.permute.xlu0 %2216
        %2218 = vrot.lane.b32.xlu0 %v2211, 80
        %v2219 = vpop.permute.xlu0 %2218
        %2220 = vrot.lane.b32.xlu0 %v2212, 80
        %v2221 = vpop.permute.xlu0 %2220
        %v2222 = vsel %vm477, %v2217, %v2219
        %v2223 = vsel %vm477, %v2219, %v2221
        %v2227 = vadd.f32 %v2206, %v2222
        %v2228 = vadd.f32 %v2207, %v2223
        %v2229 = vadd.f32 %v2208, %v2221
        %v2230 = vstv %s285
        %v2231 = vmul.f32 %v2230, %v237
        %v2232 = vmul.f32 %v2230, %v233
        %v2233 = vmul.f32 %v2230, %v238
        %2237 = vrot.lane.b32.xlu0 %v2231, 64
        %v2238 = vpop.permute.xlu0 %2237
        %2239 = vrot.lane.b32.xlu0 %v2232, 64
        %v2240 = vpop.permute.xlu0 %2239
        %2241 = vrot.lane.b32.xlu0 %v2233, 64
        %v2242 = vpop.permute.xlu0 %2241
        %v2243 = vsel %vm516, %v2238, %v2240
        %v2244 = vsel %vm516, %v2240, %v2242
        %v2248 = vadd.f32 %v2227, %v2243
        %v2249 = vadd.f32 %v2228, %v2244
        %v2250 = vadd.f32 %v2229, %v2242
        %v2251 = vstv %s334
        %v2252 = vmul.f32 %v2251, %v249
        %v2253 = vmul.f32 %v2251, %v245
        %v2254 = vmul.f32 %v2251, %v250
        %2258 = vrot.lane.b32.xlu0 %v2252, 64
        %v2259 = vpop.permute.xlu0 %2258
        %2260 = vrot.lane.b32.xlu0 %v2253, 64
        %v2261 = vpop.permute.xlu0 %2260
        %2262 = vrot.lane.b32.xlu0 %v2254, 64
        %v2263 = vpop.permute.xlu0 %2262
        %v2264 = vsel %vm516, %v2259, %v2261
        %v2265 = vsel %vm516, %v2261, %v2263
        %v2269 = vadd.f32 %v2248, %v2264
        %v2270 = vadd.f32 %v2249, %v2265
        %v2271 = vadd.f32 %v2250, %v2263
        %v2272 = vstv %s292
        %v2273 = vmul.f32 %v2272, %v237
        %v2274 = vmul.f32 %v2272, %v233
        %v2275 = vmul.f32 %v2272, %v238
        %2279 = vrot.lane.b32.xlu0 %v2273, 48
        %v2280 = vpop.permute.xlu0 %2279
        %2281 = vrot.lane.b32.xlu0 %v2274, 48
        %v2282 = vpop.permute.xlu0 %2281
        %2283 = vrot.lane.b32.xlu0 %v2275, 48
        %v2284 = vpop.permute.xlu0 %2283
        %v2285 = vsel %vm555, %v2280, %v2282
        %v2286 = vsel %vm555, %v2282, %v2284
        %v2290 = vadd.f32 %v2269, %v2285
        %v2291 = vadd.f32 %v2270, %v2286
        %v2292 = vadd.f32 %v2271, %v2284
        %v2293 = vstv %s341
        %v2294 = vmul.f32 %v2293, %v249
        %v2295 = vmul.f32 %v2293, %v245
        %v2296 = vmul.f32 %v2293, %v250
        %2300 = vrot.lane.b32.xlu0 %v2294, 48
        %v2301 = vpop.permute.xlu0 %2300
        %2302 = vrot.lane.b32.xlu0 %v2295, 48
        %v2303 = vpop.permute.xlu0 %2302
        %2304 = vrot.lane.b32.xlu0 %v2296, 48
        %v2305 = vpop.permute.xlu0 %2304
        %v2306 = vsel %vm555, %v2301, %v2303
        %v2307 = vsel %vm555, %v2303, %v2305
        %v2311 = vadd.f32 %v2290, %v2306
        %v2312 = vadd.f32 %v2291, %v2307
        %v2313 = vadd.f32 %v2292, %v2305
        %v2314 = vstv %s299
        %v2315 = vmul.f32 %v2314, %v237
        %v2316 = vmul.f32 %v2314, %v233
        %v2317 = vmul.f32 %v2314, %v238
        %2321 = vrot.lane.b32.xlu0 %v2315, 32
        %v2322 = vpop.permute.xlu0 %2321
        %2323 = vrot.lane.b32.xlu0 %v2316, 32
        %v2324 = vpop.permute.xlu0 %2323
        %2325 = vrot.lane.b32.xlu0 %v2317, 32
        %v2326 = vpop.permute.xlu0 %2325
        %v2327 = vsel %vm594, %v2322, %v2324
        %v2328 = vsel %vm594, %v2324, %v2326
        %v2332 = vadd.f32 %v2311, %v2327
        %v2333 = vadd.f32 %v2312, %v2328
        %v2334 = vadd.f32 %v2313, %v2326
        %v2335 = vstv %s348
        %v2336 = vmul.f32 %v2335, %v249
        %v2337 = vmul.f32 %v2335, %v245
        %v2338 = vmul.f32 %v2335, %v250
        %2342 = vrot.lane.b32.xlu0 %v2336, 32
        %v2343 = vpop.permute.xlu0 %2342
        %2344 = vrot.lane.b32.xlu0 %v2337, 32
        %v2345 = vpop.permute.xlu0 %2344
        %2346 = vrot.lane.b32.xlu0 %v2338, 32
        %v2347 = vpop.permute.xlu0 %2346
        %v2348 = vsel %vm594, %v2343, %v2345
        %v2349 = vsel %vm594, %v2345, %v2347
        %v2353 = vadd.f32 %v2332, %v2348
        %v2354 = vadd.f32 %v2333, %v2349
        %v2355 = vadd.f32 %v2334, %v2347
        %v2356 = vadd.s32 %v374, 3
        %v2357 = vadd.s32 %v375, 3
        %vm2358 = vcmp.ge.s32.totalorder %v2356, 0
        %vm2359 = vcmp.ge.s32.totalorder %v2357, 0
        %vm2360 = vcmp.lt.s32.totalorder %v2356, 16
        %vm2361 = vcmp.lt.s32.totalorder %v2357, 16
        %vm2362 = vmand %vm2358, %vm2360
        %vm2363 = vmand %vm2359, %vm2361
        %2367 = vrot.lane.b32.xlu0 %v2353, 122
        %v2368 = vpop.permute.xlu0 %2367
        %2369 = vrot.lane.b32.xlu0 %v2354, 122
        %v2370 = vpop.permute.xlu0 %2369
        %2371 = vrot.lane.b32.xlu0 %v2355, 122
        %v2372 = vpop.permute.xlu0 %2371
        %vm2373 = vcmask 998400
        %v2374 = vsel %vm2373, %v2368, %v2370
        %v2375 = vsel %vm2373, %v2370, %v2372
        %v2378 = vsel %vm2362, %v2374, 0.0
        %v2379 = vsel %vm2363, %v2375, 0.0
        %v2380 = vadd.f32 %v2088, %v2378
        %v2381 = vadd.f32 %v2089, %v2379
        %v2382 = vxor.u32 %v2380, 2147483648
        %v2383 = vxor.u32 %v2381, 2147483648
        %v2384 = vmul.f32 %v2382, 1.442695
        %v2385 = vpow.pop %v2384
        %v2386 = vmul.f32 %v2383, 1.442695
        %v2387 = vpow.pop %v2386
        %v2388 = vadd.f32 %v2385, 1.0
        %v2389 = vadd.f32 %v2387, 1.0
        %v2390 = vrcp.pop %v2388
        %v2391 = vmul.f32 %v2388, %v2390
        %v2392 = vsub.f32 1.0, %v2391
        %v2393 = vmul.f32 %v2390, %v2392
        %v2394 = vadd.f32 %v2390, %v2393
        %vm2395 = vweird.f32 %v2388
        %vm2396 = vweird.f32 %v2390
        %vm2397 = vmor %vm2395, %vm2396
        %v2398 = vsel %vm2397, %v2390, %v2394
        %v2399 = vand.u32 2147483647, %v2388
        %vm2400 = vcmp.eq.f32.partialorder %v2399, 8.507059e+37
        %v2401 = vand.u32 %v2388, 2147483648
        %v2402 = vor.u32 1.1754944e-38, %v2401
        %v2403 = vsel %vm2400, %v2402, %v2398
        %v2404 = vmul.f32 1.0, %v2403
        %v2405 = vrcp.pop %v2389
        %v2406 = vmul.f32 %v2389, %v2405
        %v2407 = vsub.f32 1.0, %v2406
        %v2408 = vmul.f32 %v2405, %v2407
        %v2409 = vadd.f32 %v2405, %v2408
        %vm2410 = vweird.f32 %v2389
        %vm2411 = vweird.f32 %v2405
        %vm2412 = vmor %vm2410, %vm2411
        %v2413 = vsel %vm2412, %v2405, %v2409
        %v2414 = vand.u32 2147483647, %v2389
        %vm2415 = vcmp.eq.f32.partialorder %v2414, 8.507059e+37
        %v2416 = vand.u32 %v2389, 2147483648
        %v2417 = vor.u32 1.1754944e-38, %v2416
        %v2418 = vsel %vm2415, %v2417, %v2413
        %v2419 = vmul.f32 1.0, %v2418
        %v2422 = vrot.slane %v2419, 7
        %vm2423 = vcmask 1040384
        %v2424 = vsel %vm2423, %v2404, %v2422
        %v2426 = vlaneseq
        %vm2427 = vcmp.ge.s32.totalorder %v2426, 0
        %vm2428 = vcmp.lt.s32.totalorder %v2426, 256
        %vm2429 = vmand %vm2427, %vm2428
        %2430 = vst.msk [vmem:[%s175] sm:$0x3] %vm2429, %v2424
        %s2431 = sand.u32 %s75, 1
        %s2432 = scalar_lea.sflag [#allocation4], %s2431
        %s2433 = sand.u32 %s75, 1
        %s2434 = smul.addr %s2433, 2
        %s2435 = scalar_lea.vmem [#allocation7], %s2434
        // Predicated region
        $region37: #{tpu_custom_call.1} parent=27 // pred_check
          %p2436 = pneg %p85
        $region38: #{tpu_custom_call.1} parent=27 // pred_check_branch
          %2438 = sbr.rel (%p2436) target = $region40
        $region39: #{tpu_custom_call.1} parent=27 // pred_region
          %2440 = vsyncadd %s2432, 0
          %s2441 = smul.addr %s20, 2
          %s2442 = scalar_lea.hbm %s2, %s2441
          %s2444 = sshll.u32 %s2435, 4
          %s2445 = int_to_ptr.vmem [resolvable:$true] %s2444
          %s2446 = sshll.u32 %s2442, 4
          %s2447 = int_to_ptr.hbm [resolvable:$true] %s2446
          %2449 = dma.vmem_to_hbm [thread:$0]  %s2445, 32, %s2447, %s2432
        $region40: #{tpu_custom_call.1} parent=27 // pred_fallthru
          _
      $region28: #{tpu_custom_call.1} parent=5 // pred_fallthru
        _
      %p2450 = scmp.le.s32.totalorder 2, %s15
      // Predicated region
      $region41: #{tpu_custom_call.1} parent=5 // pred_check
        %p2451 = pneg %p2450
      $region42: #{tpu_custom_call.1} parent=5 // pred_check_branch
        %2453 = sbr.rel (%p2451) target = $region44
      $region43: #{tpu_custom_call.1} parent=5 // pred_region
        %s2454 = ssub.s32 %s15, 2
        // Predicated region
        $region45: #{tpu_custom_call.1} parent=43 // pred_check
          %p2455 = pneg %p91
        $region46: #{tpu_custom_call.1} parent=43 // pred_check_branch
          %2457 = sbr.rel (%p2455) target = $region48
        $region47: #{tpu_custom_call.1} parent=43 // pred_region
          %s2458 = sand.u32 %s76, 1
          %s2459 = scalar_lea.sflag [#allocation4], %s2458
          %s2460 = sand.u32 %s76, 1
          %s2461 = smul.addr %s2460, 2
          %s2462 = scalar_lea.vmem [#allocation7], %s2461
          %2464 = dma.done %s2459, 32
        $region48: #{tpu_custom_call.1} parent=43 // pred_fallthru
          _
      $region44: #{tpu_custom_call.1} parent=5 // pred_fallthru
        _
    $region6: #{tpu_custom_call.1} parent=1 // loop_footer
      %s19 = sadd.s32 1, %s15
    $region7: #{tpu_custom_call.1} parent=1 // loop_footer_branch
      %14 = sbr.rel target = $region3
    $region8: #{tpu_custom_call.1} parent=1 // loop_exit
      _
    %2465 = vsyncpa [#allocation3], 1
    %s2466 = scalar_lea.sflag [#allocation3], 1
    %2467 = vsyncpa %s2466, 1
    %2468 = vsyncpa [#allocation4], 1
    %s2469 = scalar_lea.sflag [#allocation4], 1
    %2470 = vsyncpa %s2469, 1
    %2471 = vsyncpa [#allocation5], 1
    %s2472 = scalar_lea.sflag [#allocation5], 1
    %2473 = vsyncpa %s2472, 1

</llo_original>
